<compile_context>
chip_gen: v6e
topology: v6e:2x2x1
jax: 0.10.0
libtpu: 0.0.40
codegen_flags: <defaults>
</compile_context>

<pallas_src>
import functools
import math

import jax
import jax.numpy as jnp
import numpy as np
from jax.experimental import pallas as pl
from jax.experimental.pallas import tpu as pltpu


def _round_up(x, m):
    return ((x + m - 1) // m) * m


def _small_matvec(w, x):
    """(R, C) @ (C, T) for tiny C as VPU outer products (avoids sub-tile MXU dots)."""
    out = w[:, 0:1] * x[0:1, :]
    for c in range(1, x.shape[0]):
        out = out + w[:, c:c + 1] * x[c:c + 1, :]
    return out


# ----------------------------- Pallas kernel ------------------------------ #
def _paconv_kernel(feat_ref, xyz_ref, cent_ref, rep_ref, snw_ref, wdf_ref,
                   bout_ref, o_ref, *, in_c, out_c, num_kernels, hidden):
    """One (batch, column-tile) step of PAConv, channel-first.

    feat_ref : (in_c, T)      f32 grouped features
    xyz_ref  : (3, T)         f32 grouped xyz
    cent_ref : (in_c + 3, Gt) f32 per-group centers [center_feat ; center_xyz]
    rep_ref  : (Gt, T)        bf16 0/1 replication matrix (j // K == g)
    snw_ref  : (4, R, H+1)    f32 packed ScoreNet weights+biases (temp folded)
    wdf_ref  : (2, M*out_c, in_c) bf16 weight bank halves (BN scale folded)
    bout_ref : (out_c, 1)     f32 folded eval-BN shift
    o_ref    : (out_c, T)     output block (lane-dense, bf16 by default)
    """
    f32, bf16 = jnp.float32, jnp.bfloat16
    H, M = hidden, num_kernels

    feat = feat_ref[...]                               # (in_c, T)  f32
    featq = feat.astype(bf16)                          # bf16 MXU operand
    xyz = xyz_ref[...]                                 # (3, T)     f32
    centq = cent_ref[...].astype(bf16)                 # (in_c+3, Gt)
    rep = rep_ref[...]                                 # (Gt, T)    bf16 0/1

    # Broadcast per-group centers over the K neighbour lanes via one small MXU
    # push against a 0/1 matrix (exact for bf16 inputs, f32 accumulate).
    cb = jnp.dot(centq, rep, preferred_element_type=f32)       # (in_c+3, T)
    cfeat_b = cb[0:in_c, :]
    cxyz_b = cb[in_c:in_c + 3, :]

    # ---------------- ScoreNet (tiny, f32) ----------------
    xyz_diff = xyz - cxyz_b
    dist = jnp.sqrt(jnp.sum(xyz_diff * xyz_diff, axis=0, keepdims=True))

    s0 = snw_ref[0]                                    # (R, H+1)
    h = (_small_matvec(s0[0:H, 0:3], cxyz_b)           # w0 . center_xyz
         + _small_matvec(s0[0:H, 3:6], xyz_diff)       # w0 . xyz_diff
         + s0[0:H, 6:7] * dist                         # w0 . dist
         + s0[0:H, 7:8])                               # b0
    h = jnp.maximum(h, 0.0)

    s1 = snw_ref[1]
    h = jnp.maximum(
        jnp.dot(s1[0:H, 0:H], h, preferred_element_type=f32) + s1[0:H, H:H + 1], 0.0)
    s2 = snw_ref[2]
    h = jnp.maximum(
        jnp.dot(s2[0:H, 0:H], h, preferred_element_type=f32) + s2[0:H, H:H + 1], 0.0)
    s3 = snw_ref[3]                                    # 1/temp_factor pre-folded
    logits = jnp.dot(s3[0:M, 0:H], h, preferred_element_type=f32) + s3[0:M, H:H + 1]

    # softmax over the M kernel axis (torch: softmax over channel dim=1).
    logits = logits - jnp.max(logits, axis=0, keepdims=True)
    e = jnp.exp(logits)
    scores = e * pl.reciprocal(jnp.sum(e, axis=0, keepdims=True), approx=True)  # (M, T)

    # ------- weight-bank matmul + assign_score (bf16 MXU, f32 accumulate) -------
    diffq = (featq.astype(f32) - cfeat_b).astype(bf16)          # feat - center
    wd = wdf_ref[0]                                    # (M*out_c, in_c) bf16
    wf = wdf_ref[1]
    g = (jnp.dot(wd, diffq, preferred_element_type=f32)
         + jnp.dot(wf, featq, preferred_element_type=f32))      # (M*out_c, T)

    acc = scores[0:1, :] * g[0:out_c, :]
    for m in range(1, M):
        acc = acc + scores[m:m + 1, :] * g[m * out_c:(m + 1) * out_c, :]

    # folded eval-mode outer BN shift + ReLU, lane-dense store.
    o_ref[...] = jnp.maximum(acc + bout_ref[...], 0.0).astype(o_ref.dtype)


def _paconv_pallas(feat, xyz, cent, rep, snw, wdf, bout, *, in_c, out_c,
                   num_kernels, hidden, tile, gt, out_dtype, cost):
    B, _, npk_pad = feat.shape
    n_tiles = npk_pad // tile

    def full_spec(arr):
        if arr.ndim == 2:
            return pl.BlockSpec(arr.shape, lambda b, i: (0, 0))
        return pl.BlockSpec(arr.shape, lambda b, i: (0, 0, 0))

    grid_spec = pltpu.PrefetchScalarGridSpec(
        num_scalar_prefetch=0,
        grid=(B, n_tiles),
        in_specs=[
            pl.BlockSpec((None, in_c, tile), lambda b, i: (b, 0, i)),
            pl.BlockSpec((None, 3, tile), lambda b, i: (b, 0, i)),
            pl.BlockSpec((None, in_c + 3, gt), lambda b, i: (b, 0, i)),
            full_spec(rep),
            full_spec(snw),
            full_spec(wdf),
            full_spec(bout),
        ],
        out_specs=pl.BlockSpec((None, out_c, tile), lambda b, i: (b, 0, i)),
    )
    kernel = functools.partial(_paconv_kernel, in_c=in_c, out_c=out_c,
                               num_kernels=num_kernels, hidden=hidden)
    return pl.pallas_call(
        kernel,
        out_shape=jax.ShapeDtypeStruct((B, out_c, npk_pad), out_dtype),
        grid_spec=grid_spec,
        compiler_params=pltpu.CompilerParams(
            dimension_semantics=("parallel", "parallel"),
            vmem_limit_bytes=48 * 1024 * 1024,       # v7x-safe (< 64 MiB physical)
        ),
        cost_estimate=cost,
    )(feat, xyz, cent, rep, snw, wdf, bout)


# ------------------------------- JAX glue --------------------------------- #
def _pack_params(params, in_c, out_c, num_kernels, temp_factor):
    """Fold & pack parameters into 3 resident kernel constants."""
    f32, bf16 = jnp.float32, jnp.bfloat16
    H = params['w0'].shape[1]
    M = num_kernels
    R = max(H, M)

    def pad_rc(a):
        return jnp.pad(a, ((0, R - a.shape[0]), (0, H + 1 - a.shape[1])))

    w0t = params['w0'].T.astype(f32)                            # (H, 7)
    l0 = jnp.concatenate([w0t[:, 0:3], w0t[:, 3:6], w0t[:, 6:7],
                          params['b0'].reshape(-1, 1).astype(f32)], axis=1)
    l1 = jnp.concatenate([params['w1'].T, params['b1'].reshape(-1, 1)],
                         axis=1).astype(f32)
    l2 = jnp.concatenate([params['w2'].T, params['b2'].reshape(-1, 1)],
                         axis=1).astype(f32)
    inv_t = 1.0 / float(temp_factor)                            # temp folded here
    l3 = jnp.concatenate([params['w3'].T * inv_t,
                          params['b3'].reshape(-1, 1) * inv_t], axis=1).astype(f32)
    snw = jnp.stack([pad_rc(l0), pad_rc(l1), pad_rc(l2), pad_rc(l3)], axis=0)

    # Weight bank (M, 2*in_c, out_c): diff / identity halves, eval-BN scale
    # folded in, rows laid out as (m*out_c + c) so G-row slices match kernels.
    wb = params['wb'].astype(f32)
    scale = params['bn_scale'].reshape(out_c)
    wd = (wb[:, :in_c, :] * scale[None, None, :]).transpose(0, 2, 1).reshape(
        M * out_c, in_c)
    wf = (wb[:, in_c:, :] * scale[None, None, :]).transpose(0, 2, 1).reshape(
        M * out_c, in_c)
    wdf = jnp.stack([wd, wf], axis=0).astype(bf16)              # (2, M*out_c, in_c)
    bout = params['bn_shift'].reshape(out_c, 1).astype(f32)
    return snw, wdf, bout, H


def _choose_tile(npk, K, B, tile_request):
    """Lane-aligned column tile; keeps the per-group center block aligned too."""
    unit = 128 * K                                  # multi-tile granularity: Gt % 128 == 0
    lane_unit = (128 * K) // math.gcd(128, K)       # lcm(128, K) for single-tile path
    tile_request = max(128, int(tile_request))
    if npk > unit:
        cap = min(max(tile_request, unit) // unit, pl.cdiv(npk, unit))
        cands = [u * unit for u in range(1, cap + 1)]
        # least total padding first, then the biggest tile
        t = min(cands, key=lambda c: (pl.cdiv(npk, c) * c, -c))
        npk_pad = pl.cdiv(npk, t) * t
        # v7x has two TensorCores: keep the grid at >= 2 independent steps.
        if B * (npk_pad // t) < 2 and npk_pad >= 2 * unit:
            t = (npk_pad // (2 * unit)) * unit
            npk_pad = pl.cdiv(npk, t) * t
    else:
        # Small problems: one column tile per batch element (full-dim center block).
        t = _round_up(npk, lane_unit)
        npk_pad = t
    return t, npk_pad


def paconv_forward(features, points_xyz, params, *, num_kernels, out_c,
                   tile=2048, out_dtype=jnp.bfloat16, temp_factor=1.0):
    """features: (B, in_c, npoint, K); points_xyz: (B, 3, npoint, K)  (NCHW)."""
    B, in_c, npoint, K = features.shape
    npk = npoint * K

    t, npk_pad = _choose_tile(npk, K, B, tile)
    gt = t // K
    npoint_pad = npk_pad // K

    # Stream features / xyz directly as f32 (no wrapper concat and no separate
    # bf16 cast pass: reading f32 once in-kernel is cheaper end-to-end).
    feat_flat = features.reshape(B, in_c, npk).astype(jnp.float32)
    xyz_flat = points_xyz.reshape(B, 3, npk).astype(jnp.float32)
    if npk_pad != npk:
        pad = ((0, 0), (0, 0), (0, npk_pad - npk))
        feat_flat = jnp.pad(feat_flat, pad)
        xyz_flat = jnp.pad(xyz_flat, pad)

    # Per-group centers (k == 0 neighbour): only 1/K of the main stream.
    cent = jnp.concatenate([features[:, :, :, 0], points_xyz[:, :, :, 0]],
                           axis=1).astype(jnp.float32)          # (B, in_c+3, npoint)
    if npoint_pad != npoint:
        cent = jnp.pad(cent, ((0, 0), (0, 0), (0, npoint_pad - npoint)))

    # Constant 0/1 replication matrix rep[g, j] = (j // K == g), VMEM-resident.
    col = jnp.arange(t, dtype=jnp.int32)[None, :]
    row = jnp.arange(gt, dtype=jnp.int32)[:, None] * K
    rep = ((col >= row) & (col < row + K)).astype(jnp.bfloat16)

    snw, wdf, bout, hidden = _pack_params(params, in_c, out_c, num_kernels,
                                          temp_factor)

    mc = num_kernels * out_c
    flops = 2 * B * npk_pad * (2 * in_c * mc + (in_c + 3) * gt
                               + 3 * hidden * hidden + 8 * hidden + mc)
    cost = pl.CostEstimate(
        flops=int(flops),
        transcendentals=int(B * npk_pad * (num_kernels + 2)),
        bytes_accessed=int(4 * B * (in_c + 3) * (npk_pad + npoint_pad)
                           + np.dtype(out_dtype).itemsize * B * out_c * npk_pad
                           + 2 * rep.size + 4 * snw.size + 2 * wdf.size
                           + 4 * bout.size))

    out = _paconv_pallas(feat_flat, xyz_flat, cent, rep, snw, wdf, bout,
                         in_c=in_c, out_c=out_c, num_kernels=num_kernels,
                         hidden=hidden, tile=t, gt=gt, out_dtype=out_dtype,
                         cost=cost)
    new_features = out[..., :npk].reshape(B, out_c, npoint, K)   # NCHW, no transpose
    return new_features, points_xyz


# --------------------------- deterministic init ---------------------------- #
def init_params(key, in_channels, out_channels, num_kernels,
                scorenet_hidden=(16, 16, 16)):
    """Synthetic parameters matching PAConv shapes, eval-mode BN pre-folded."""
    in_c2 = 2 * in_channels
    eps = 1e-5
    dims = (7,) + tuple(scorenet_hidden) + (num_kernels,)
    n_layers = len(dims) - 1
    ks = jax.random.split(key, 4 * n_layers + 8)
    params = {}
    for i in range(n_layers - 1):                # conv (no bias) + folded eval-BN
        w = jax.random.normal(ks[4 * i], (dims[i], dims[i + 1]), jnp.float32)
        w = w * (1.0 / np.sqrt(dims[i]))
        rv = jax.random.uniform(ks[4 * i + 1], (dims[i + 1],), jnp.float32, 0.5, 1.5)
        rm = jax.random.normal(ks[4 * i + 2], (dims[i + 1],), jnp.float32) * 0.05
        s = 1.0 / jnp.sqrt(rv + eps)
        params[f'w{i}'] = w * s[None, :]
        params[f'b{i}'] = (-rm * s).reshape(1, dims[i + 1])
    i = n_layers - 1                             # last conv: bias, no BN/act
    w = jax.random.normal(ks[4 * i], (dims[i], dims[i + 1]), jnp.float32)
    params[f'w{i}'] = w * (1.0 / np.sqrt(dims[i]))
    params[f'b{i}'] = jax.random.normal(ks[4 * i + 1], (1, dims[i + 1]),
                                        jnp.float32) * 0.01

    # weight bank: (M, 2*in_c, out_c), kaiming-normal-like scale
    params['wb'] = jax.random.normal(
        ks[-3], (num_kernels, in_c2, out_channels), jnp.float32) * np.sqrt(
            2.0 / (in_c2 * out_channels))

    # outer BN (eval mode) folded to per-channel scale/shift
    rv = jax.random.uniform(ks[-2], (out_channels,), jnp.float32, 0.5, 1.5)
    rm = jax.random.normal(ks[-1], (out_channels,), jnp.float32) * 0.05
    s = 1.0 / jnp.sqrt(rv + eps)
    params['bn_scale'] = s.reshape(1, out_channels)
    params['bn_shift'] = (-rm * s).reshape(1, out_channels)
    return params


# ------------------------- plain-JAX reference ----------------------------- #
def reference_forward(features, points_xyz, params, num_kernels, out_c,
                      temp_factor=1.0):
    """Channel-last f32 reference (PyTorch-style math) mirroring the kernel's
    bf16 quantization points."""
    f32, bf16 = jnp.float32, jnp.bfloat16
    B, in_c, npoint, K = features.shape
    M = num_kernels

    def q(x):
        return x.astype(bf16).astype(f32)

    # kernel_input == 'w_neighbor'
    featq = q(features)
    cfeatq = q(features[..., :1])
    diff = q(featq - jnp.broadcast_to(cfeatq, features.shape))

    # scorenet_input == 'w_neighbor_dist'
    cxyzq = q(points_xyz[..., :1])
    cxyz_b = jnp.broadcast_to(cxyzq, points_xyz.shape)
    xyz_diff = points_xyz.astype(f32) - cxyz_b
    dist = jnp.sqrt(jnp.sum(xyz_diff * xyz_diff, axis=1, keepdims=True))
    x = jnp.concatenate([cxyz_b, xyz_diff, dist], axis=1)        # (B, 7, npoint, K)

    xl = x.transpose(0, 2, 3, 1)
    h = jnp.maximum(xl @ params['w0'] + params['b0'], 0.0)
    h = jnp.maximum(h @ params['w1'] + params['b1'], 0.0)
    h = jnp.maximum(h @ params['w2'] + params['b2'], 0.0)
    logits = (h @ params['w3'] + params['b3']) / temp_factor
    scores = jax.nn.softmax(logits, axis=-1)                     # (B, npoint, K, M)

    scale = params['bn_scale'].reshape(out_c)
    wd = q(params['wb'][:, :in_c, :] * scale[None, None, :])     # (M, in_c, out_c)
    wf = q(params['wb'][:, in_c:, :] * scale[None, None, :])

    fd = diff.transpose(0, 2, 3, 1)                              # (B, npoint, K, in_c)
    ff = featq.transpose(0, 2, 3, 1)
    nf = (jnp.einsum('bnkc,mcd->bnkmd', fd, wd)
          + jnp.einsum('bnkc,mcd->bnkmd', ff, wf))
    nf = jnp.sum(scores[..., None] * nf, axis=3)                 # assign_score
    nf = nf.transpose(0, 3, 1, 2)                                # (B, out_c, npoint, K)
    nf = nf + params['bn_shift'].reshape(1, out_c, 1, 1)
    return jnp.maximum(nf, 0.0), points_xyz


# ---------------------------------- main ----------------------------------- #
if __name__ == "__main__":
    key = jax.random.PRNGKey(0)
    configs = [
        dict(B=2, in_c=8, npoint=36, K=8, out_c=16, M=4),    # single-tile path
        dict(B=2, in_c=8, npoint=320, K=8, out_c=16, M=4),   # multi-tile + ragged pad
    ]
    for cfg in configs:
        B, in_c, npoint, K = cfg['B'], cfg['in_c'], cfg['npoint'], cfg['K']
        out_c, M = cfg['out_c'], cfg['M']
        kf, kx, kp, key = jax.random.split(key, 4)
        features = jax.random.normal(kf, (B, in_c, npoint, K), jnp.float32)
        points_xyz = jax.random.normal(kx, (B, 3, npoint, K), jnp.float32)
        params = init_params(kp, in_c, out_c, M)

        ref, _ = reference_forward(features, points_xyz, params, M, out_c)
        ref = np.asarray(jax.block_until_ready(ref))

        out, _ = paconv_forward(features, points_xyz, params,
                                num_kernels=M, out_c=out_c)
        out = np.asarray(jax.block_until_ready(out).astype(jnp.float32))
        np.testing.assert_allclose(out, ref, rtol=2e-2, atol=1e-2)

    print("KERNEL_OK")
</pallas_src>

<mosaic_0001>
module attributes {stable_mosaic.version = 11 : i64} {
  func.func @_paconv_kernel(%arg0: i32, %arg1: i32, %arg2: memref<1x8x384xf32, #tpu.memory_space<vmem>>, %arg3: memref<1x3x384xf32, #tpu.memory_space<vmem>>, %arg4: memref<1x11x48xf32, #tpu.memory_space<vmem>>, %arg5: memref<48x384xbf16, #tpu.memory_space<vmem>>, %arg6: memref<4x16x17xf32, #tpu.memory_space<vmem>>, %arg7: memref<2x64x8xbf16, #tpu.memory_space<vmem>>, %arg8: memref<16x1xf32, #tpu.memory_space<vmem>>, %arg9: memref<1x16x384xbf16, #tpu.memory_space<vmem>>) attributes {dimension_semantics = [#tpu.dimension_semantics<parallel>, #tpu.dimension_semantics<parallel>], iteration_bounds = array<i64: 2, 1>, scalar_prefetch = 0 : i64, scratch_operands = 0 : i64, tpu.core_type = #tpu.core_type<tc>, window_params = [{transform_indices = @transform_0, window_bounds = array<i64: 1, 8, 384>}, {transform_indices = @transform_1, window_bounds = array<i64: 1, 3, 384>}, {transform_indices = @transform_2, window_bounds = array<i64: 1, 11, 48>}, {pipeline_mode = #tpu.pipeline_mode<synchronous>, transform_indices = @transform_3, window_bounds = array<i64: 48, 384>}, {pipeline_mode = #tpu.pipeline_mode<synchronous>, transform_indices = @transform_4, window_bounds = array<i64: 4, 16, 17>}, {pipeline_mode = #tpu.pipeline_mode<synchronous>, transform_indices = @transform_5, window_bounds = array<i64: 2, 64, 8>}, {pipeline_mode = #tpu.pipeline_mode<synchronous>, transform_indices = @transform_6, window_bounds = array<i64: 16, 1>}, {transform_indices = @transform_7, window_bounds = array<i64: 1, 16, 384>}]} {
    %c0 = arith.constant 0 : index
    %c0_0 = arith.constant 0 : index
    %c0_1 = arith.constant 0 : index
    %0 = vector.load %arg2[%c0, %c0_0, %c0_1] : memref<1x8x384xf32, #tpu.memory_space<vmem>>, vector<1x8x384xf32>
    %1 = vector.shape_cast %0 : vector<1x8x384xf32> to vector<8x384xf32>
    %2 = arith.truncf %1 : vector<8x384xf32> to vector<8x384xbf16>
    %c0_2 = arith.constant 0 : index
    %c0_3 = arith.constant 0 : index
    %c0_4 = arith.constant 0 : index
    %3 = vector.load %arg3[%c0_2, %c0_3, %c0_4] : memref<1x3x384xf32, #tpu.memory_space<vmem>>, vector<1x3x384xf32>
    %4 = vector.shape_cast %3 : vector<1x3x384xf32> to vector<3x384xf32>
    %c0_5 = arith.constant 0 : index
    %c0_6 = arith.constant 0 : index
    %c0_7 = arith.constant 0 : index
    %5 = vector.load %arg4[%c0_5, %c0_6, %c0_7] : memref<1x11x48xf32, #tpu.memory_space<vmem>>, vector<1x11x48xf32>
    %6 = vector.shape_cast %5 : vector<1x11x48xf32> to vector<11x48xf32>
    %7 = arith.truncf %6 : vector<11x48xf32> to vector<11x48xbf16>
    %c0_8 = arith.constant 0 : index
    %c0_9 = arith.constant 0 : index
    %8 = vector.load %arg5[%c0_8, %c0_9] : memref<48x384xbf16, #tpu.memory_space<vmem>>, vector<48x384xbf16>
    %cst = arith.constant dense<0.000000e+00> : vector<11x384xf32>
    %9 = tpu.matmul %7, %8, %cst {dimension_numbers = #tpu.dot_dimension_numbers<[1], [0], [0], [1], [0, 0, 1, 1], [], []>} : vector<11x48xbf16>, vector<48x384xbf16>, vector<11x384xf32> -> vector<11x384xf32>
    %10 = vector.extract_strided_slice %9 {offsets = [0, 0], sizes = [8, 384], strides = [1, 1]} : vector<11x384xf32> to vector<8x384xf32>
    %11 = vector.extract_strided_slice %9 {offsets = [8, 0], sizes = [3, 384], strides = [1, 1]} : vector<11x384xf32> to vector<3x384xf32>
    %12 = arith.subf %4, %11 : vector<3x384xf32>
    %13 = arith.mulf %12, %12 : vector<3x384xf32>
    %cst_10 = arith.constant dense<0.000000e+00> : vector<384xf32>
    %14 = vector.multi_reduction <add>, %13, %cst_10 [0] : vector<3x384xf32> to vector<384xf32>
    %15 = vector.shape_cast %14 : vector<384xf32> to vector<1x384xf32>
    %16 = math.sqrt %15 : vector<1x384xf32>
    %c0_11 = arith.constant 0 : index
    %c0_12 = arith.constant 0 : index
    %c0_13 = arith.constant 0 : index
    %17 = vector.load %arg6[%c0_11, %c0_12, %c0_13] : memref<4x16x17xf32, #tpu.memory_space<vmem>>, vector<1x16x17xf32>
    %18 = vector.shape_cast %17 : vector<1x16x17xf32> to vector<16x17xf32>
    %19 = vector.extract_strided_slice %18 {offsets = [0, 0], sizes = [16, 3], strides = [1, 1]} : vector<16x17xf32> to vector<16x3xf32>
    %20 = vector.extract_strided_slice %19 {offsets = [0, 0], sizes = [16, 1], strides = [1, 1]} : vector<16x3xf32> to vector<16x1xf32>
    %21 = vector.extract_strided_slice %11 {offsets = [0, 0], sizes = [1, 384], strides = [1, 1]} : vector<3x384xf32> to vector<1x384xf32>
    %22 = vector.broadcast %20 : vector<16x1xf32> to vector<16x384xf32>
    %23 = vector.broadcast %21 : vector<1x384xf32> to vector<16x384xf32>
    %24 = arith.mulf %22, %23 : vector<16x384xf32>
    %25 = vector.extract_strided_slice %19 {offsets = [0, 1], sizes = [16, 1], strides = [1, 1]} : vector<16x3xf32> to vector<16x1xf32>
    %26 = vector.extract_strided_slice %11 {offsets = [1, 0], sizes = [1, 384], strides = [1, 1]} : vector<3x384xf32> to vector<1x384xf32>
    %27 = vector.broadcast %25 : vector<16x1xf32> to vector<16x384xf32>
    %28 = vector.broadcast %26 : vector<1x384xf32> to vector<16x384xf32>
    %29 = arith.mulf %27, %28 : vector<16x384xf32>
    %30 = arith.addf %24, %29 : vector<16x384xf32>
    %31 = vector.extract_strided_slice %19 {offsets = [0, 2], sizes = [16, 1], strides = [1, 1]} : vector<16x3xf32> to vector<16x1xf32>
    %32 = vector.extract_strided_slice %11 {offsets = [2, 0], sizes = [1, 384], strides = [1, 1]} : vector<3x384xf32> to vector<1x384xf32>
    %33 = vector.broadcast %31 : vector<16x1xf32> to vector<16x384xf32>
    %34 = vector.broadcast %32 : vector<1x384xf32> to vector<16x384xf32>
    %35 = arith.mulf %33, %34 : vector<16x384xf32>
    %36 = arith.addf %30, %35 : vector<16x384xf32>
    %37 = vector.extract_strided_slice %18 {offsets = [0, 3], sizes = [16, 3], strides = [1, 1]} : vector<16x17xf32> to vector<16x3xf32>
    %38 = vector.extract_strided_slice %37 {offsets = [0, 0], sizes = [16, 1], strides = [1, 1]} : vector<16x3xf32> to vector<16x1xf32>
    %39 = vector.extract_strided_slice %12 {offsets = [0, 0], sizes = [1, 384], strides = [1, 1]} : vector<3x384xf32> to vector<1x384xf32>
    %40 = vector.broadcast %38 : vector<16x1xf32> to vector<16x384xf32>
    %41 = vector.broadcast %39 : vector<1x384xf32> to vector<16x384xf32>
    %42 = arith.mulf %40, %41 : vector<16x384xf32>
    %43 = vector.extract_strided_slice %37 {offsets = [0, 1], sizes = [16, 1], strides = [1, 1]} : vector<16x3xf32> to vector<16x1xf32>
    %44 = vector.extract_strided_slice %12 {offsets = [1, 0], sizes = [1, 384], strides = [1, 1]} : vector<3x384xf32> to vector<1x384xf32>
    %45 = vector.broadcast %43 : vector<16x1xf32> to vector<16x384xf32>
    %46 = vector.broadcast %44 : vector<1x384xf32> to vector<16x384xf32>
    %47 = arith.mulf %45, %46 : vector<16x384xf32>
    %48 = arith.addf %42, %47 : vector<16x384xf32>
    %49 = vector.extract_strided_slice %37 {offsets = [0, 2], sizes = [16, 1], strides = [1, 1]} : vector<16x3xf32> to vector<16x1xf32>
    %50 = vector.extract_strided_slice %12 {offsets = [2, 0], sizes = [1, 384], strides = [1, 1]} : vector<3x384xf32> to vector<1x384xf32>
    %51 = vector.broadcast %49 : vector<16x1xf32> to vector<16x384xf32>
    %52 = vector.broadcast %50 : vector<1x384xf32> to vector<16x384xf32>
    %53 = arith.mulf %51, %52 : vector<16x384xf32>
    %54 = arith.addf %48, %53 : vector<16x384xf32>
    %55 = arith.addf %36, %54 : vector<16x384xf32>
    %56 = vector.extract_strided_slice %18 {offsets = [0, 6], sizes = [16, 1], strides = [1, 1]} : vector<16x17xf32> to vector<16x1xf32>
    %57 = vector.broadcast %56 : vector<16x1xf32> to vector<16x384xf32>
    %58 = vector.broadcast %16 : vector<1x384xf32> to vector<16x384xf32>
    %59 = arith.mulf %57, %58 : vector<16x384xf32>
    %60 = arith.addf %55, %59 : vector<16x384xf32>
    %61 = vector.extract_strided_slice %18 {offsets = [0, 7], sizes = [16, 1], strides = [1, 1]} : vector<16x17xf32> to vector<16x1xf32>
    %62 = vector.broadcast %61 : vector<16x1xf32> to vector<16x384xf32>
    %63 = arith.addf %60, %62 : vector<16x384xf32>
    %cst_14 = arith.constant 0.000000e+00 : f32
    %64 = vector.broadcast %cst_14 : f32 to vector<16x384xf32>
    %65 = arith.maximumf %63, %64 : vector<16x384xf32>
    %c1 = arith.constant 1 : index
    %c0_15 = arith.constant 0 : index
    %c0_16 = arith.constant 0 : index
    %66 = vector.load %arg6[%c1, %c0_15, %c0_16] : memref<4x16x17xf32, #tpu.memory_space<vmem>>, vector<1x16x17xf32>
    %67 = vector.shape_cast %66 : vector<1x16x17xf32> to vector<16x17xf32>
    %68 = vector.extract_strided_slice %67 {offsets = [0, 0], sizes = [16, 16], strides = [1, 1]} : vector<16x17xf32> to vector<16x16xf32>
    %cst_17 = arith.constant dense<0.000000e+00> : vector<16x384xf32>
    %69 = tpu.matmul %68, %65, %cst_17 {dimension_numbers = #tpu.dot_dimension_numbers<[1], [0], [0], [1], [0, 0, 1, 1], [], []>} : vector<16x16xf32>, vector<16x384xf32>, vector<16x384xf32> -> vector<16x384xf32>
    %70 = vector.extract_strided_slice %67 {offsets = [0, 16], sizes = [16, 1], strides = [1, 1]} : vector<16x17xf32> to vector<16x1xf32>
    %71 = vector.broadcast %70 : vector<16x1xf32> to vector<16x384xf32>
    %72 = arith.addf %69, %71 : vector<16x384xf32>
    %cst_18 = arith.constant 0.000000e+00 : f32
    %73 = vector.broadcast %cst_18 : f32 to vector<16x384xf32>
    %74 = arith.maximumf %72, %73 : vector<16x384xf32>
    %c2 = arith.constant 2 : index
    %c0_19 = arith.constant 0 : index
    %c0_20 = arith.constant 0 : index
    %75 = vector.load %arg6[%c2, %c0_19, %c0_20] : memref<4x16x17xf32, #tpu.memory_space<vmem>>, vector<1x16x17xf32>
    %76 = vector.shape_cast %75 : vector<1x16x17xf32> to vector<16x17xf32>
    %77 = vector.extract_strided_slice %76 {offsets = [0, 0], sizes = [16, 16], strides = [1, 1]} : vector<16x17xf32> to vector<16x16xf32>
    %cst_21 = arith.constant dense<0.000000e+00> : vector<16x384xf32>
    %78 = tpu.matmul %77, %74, %cst_21 {dimension_numbers = #tpu.dot_dimension_numbers<[1], [0], [0], [1], [0, 0, 1, 1], [], []>} : vector<16x16xf32>, vector<16x384xf32>, vector<16x384xf32> -> vector<16x384xf32>
    %79 = vector.extract_strided_slice %76 {offsets = [0, 16], sizes = [16, 1], strides = [1, 1]} : vector<16x17xf32> to vector<16x1xf32>
    %80 = vector.broadcast %79 : vector<16x1xf32> to vector<16x384xf32>
    %81 = arith.addf %78, %80 : vector<16x384xf32>
    %cst_22 = arith.constant 0.000000e+00 : f32
    %82 = vector.broadcast %cst_22 : f32 to vector<16x384xf32>
    %83 = arith.maximumf %81, %82 : vector<16x384xf32>
    %c3 = arith.constant 3 : index
    %c0_23 = arith.constant 0 : index
    %c0_24 = arith.constant 0 : index
    %84 = vector.load %arg6[%c3, %c0_23, %c0_24] : memref<4x16x17xf32, #tpu.memory_space<vmem>>, vector<1x16x17xf32>
    %85 = vector.shape_cast %84 : vector<1x16x17xf32> to vector<16x17xf32>
    %86 = vector.extract_strided_slice %85 {offsets = [0, 0], sizes = [4, 16], strides = [1, 1]} : vector<16x17xf32> to vector<4x16xf32>
    %cst_25 = arith.constant dense<0.000000e+00> : vector<4x384xf32>
    %87 = tpu.matmul %86, %83, %cst_25 {dimension_numbers = #tpu.dot_dimension_numbers<[1], [0], [0], [1], [0, 0, 1, 1], [], []>} : vector<4x16xf32>, vector<16x384xf32>, vector<4x384xf32> -> vector<4x384xf32>
    %88 = vector.extract_strided_slice %85 {offsets = [0, 16], sizes = [4, 1], strides = [1, 1]} : vector<16x17xf32> to vector<4x1xf32>
    %89 = vector.broadcast %88 : vector<4x1xf32> to vector<4x384xf32>
    %90 = arith.addf %87, %89 : vector<4x384xf32>
    %cst_26 = arith.constant dense<0xFF800000> : vector<384xf32>
    %91 = vector.multi_reduction <maximumf>, %90, %cst_26 [0] : vector<4x384xf32> to vector<384xf32>
    %92 = vector.shape_cast %91 : vector<384xf32> to vector<1x384xf32>
    %93 = vector.broadcast %92 : vector<1x384xf32> to vector<4x384xf32>
    %94 = arith.subf %90, %93 : vector<4x384xf32>
    %95 = math.exp %94 : vector<4x384xf32>
    %cst_27 = arith.constant dense<0.000000e+00> : vector<384xf32>
    %96 = vector.multi_reduction <add>, %95, %cst_27 [0] : vector<4x384xf32> to vector<384xf32>
    %97 = vector.shape_cast %96 : vector<384xf32> to vector<1x384xf32>
    %98 = tpu.reciprocal %97 {approx = true} : vector<1x384xf32> -> vector<1x384xf32>
    %99 = vector.broadcast %98 : vector<1x384xf32> to vector<4x384xf32>
    %100 = arith.mulf %95, %99 : vector<4x384xf32>
    %101 = arith.extf %2 : vector<8x384xbf16> to vector<8x384xf32>
    %102 = arith.subf %101, %10 : vector<8x384xf32>
    %103 = arith.truncf %102 : vector<8x384xf32> to vector<8x384xbf16>
    %c0_28 = arith.constant 0 : index
    %c0_29 = arith.constant 0 : index
    %c0_30 = arith.constant 0 : index
    %104 = vector.load %arg7[%c0_28, %c0_29, %c0_30] : memref<2x64x8xbf16, #tpu.memory_space<vmem>>, vector<1x64x8xbf16>
    %105 = vector.shape_cast %104 : vector<1x64x8xbf16> to vector<64x8xbf16>
    %c1_31 = arith.constant 1 : index
    %c0_32 = arith.constant 0 : index
    %c0_33 = arith.constant 0 : index
    %106 = vector.load %arg7[%c1_31, %c0_32, %c0_33] : memref<2x64x8xbf16, #tpu.memory_space<vmem>>, vector<1x64x8xbf16>
    %107 = vector.shape_cast %106 : vector<1x64x8xbf16> to vector<64x8xbf16>
    %cst_34 = arith.constant dense<0.000000e+00> : vector<64x384xf32>
    %108 = tpu.matmul %105, %103, %cst_34 {dimension_numbers = #tpu.dot_dimension_numbers<[1], [0], [0], [1], [0, 0, 1, 1], [], []>} : vector<64x8xbf16>, vector<8x384xbf16>, vector<64x384xf32> -> vector<64x384xf32>
    %cst_35 = arith.constant dense<0.000000e+00> : vector<64x384xf32>
    %109 = tpu.matmul %107, %2, %cst_35 {dimension_numbers = #tpu.dot_dimension_numbers<[1], [0], [0], [1], [0, 0, 1, 1], [], []>} : vector<64x8xbf16>, vector<8x384xbf16>, vector<64x384xf32> -> vector<64x384xf32>
    %110 = arith.addf %108, %109 : vector<64x384xf32>
    %111 = vector.extract_strided_slice %100 {offsets = [0, 0], sizes = [1, 384], strides = [1, 1]} : vector<4x384xf32> to vector<1x384xf32>
    %112 = vector.extract_strided_slice %110 {offsets = [0, 0], sizes = [16, 384], strides = [1, 1]} : vector<64x384xf32> to vector<16x384xf32>
    %113 = vector.broadcast %111 : vector<1x384xf32> to vector<16x384xf32>
    %114 = arith.mulf %113, %112 : vector<16x384xf32>
    %115 = vector.extract_strided_slice %100 {offsets = [1, 0], sizes = [1, 384], strides = [1, 1]} : vector<4x384xf32> to vector<1x384xf32>
    %116 = vector.extract_strided_slice %110 {offsets = [16, 0], sizes = [16, 384], strides = [1, 1]} : vector<64x384xf32> to vector<16x384xf32>
    %117 = vector.broadcast %115 : vector<1x384xf32> to vector<16x384xf32>
    %118 = arith.mulf %117, %116 : vector<16x384xf32>
    %119 = arith.addf %114, %118 : vector<16x384xf32>
    %120 = vector.extract_strided_slice %100 {offsets = [2, 0], sizes = [1, 384], strides = [1, 1]} : vector<4x384xf32> to vector<1x384xf32>
    %121 = vector.extract_strided_slice %110 {offsets = [32, 0], sizes = [16, 384], strides = [1, 1]} : vector<64x384xf32> to vector<16x384xf32>
    %122 = vector.broadcast %120 : vector<1x384xf32> to vector<16x384xf32>
    %123 = arith.mulf %122, %121 : vector<16x384xf32>
    %124 = arith.addf %119, %123 : vector<16x384xf32>
    %125 = vector.extract_strided_slice %100 {offsets = [3, 0], sizes = [1, 384], strides = [1, 1]} : vector<4x384xf32> to vector<1x384xf32>
    %126 = vector.extract_strided_slice %110 {offsets = [48, 0], sizes = [16, 384], strides = [1, 1]} : vector<64x384xf32> to vector<16x384xf32>
    %127 = vector.broadcast %125 : vector<1x384xf32> to vector<16x384xf32>
    %128 = arith.mulf %127, %126 : vector<16x384xf32>
    %129 = arith.addf %124, %128 : vector<16x384xf32>
    %c0_36 = arith.constant 0 : index
    %c0_37 = arith.constant 0 : index
    %130 = vector.load %arg8[%c0_36, %c0_37] : memref<16x1xf32, #tpu.memory_space<vmem>>, vector<16x1xf32>
    %131 = vector.broadcast %130 : vector<16x1xf32> to vector<16x384xf32>
    %132 = arith.addf %129, %131 : vector<16x384xf32>
    %cst_38 = arith.constant 0.000000e+00 : f32
    %133 = vector.broadcast %cst_38 : f32 to vector<16x384xf32>
    %134 = arith.maximumf %132, %133 : vector<16x384xf32>
    %135 = arith.truncf %134 : vector<16x384xf32> to vector<16x384xbf16>
    %c0_39 = arith.constant 0 : index
    %c0_40 = arith.constant 0 : index
    %c0_41 = arith.constant 0 : index
    %136 = vector.load %arg9[%c0_39, %c0_40, %c0_41] : memref<1x16x384xbf16, #tpu.memory_space<vmem>>, vector<1x16x384xbf16>
    %137 = vector.shape_cast %136 : vector<1x16x384xbf16> to vector<16x384xbf16>
    %138 = vector.shape_cast %135 : vector<16x384xbf16> to vector<1x16x384xbf16>
    tpu.vector_store %arg9[%c0_39, %c0_40, %c0_41], %138 {strides = array<i32>} : memref<1x16x384xbf16, #tpu.memory_space<vmem>>, vector<1x16x384xbf16>,
    return
  }
  func.func @transform_0(%arg0: i32, %arg1: i32) -> (i32, i32, i32) {
    %c0_i32 = arith.constant 0 : i32
    %c0_i32_0 = arith.constant 0 : i32
    return %arg0, %c0_i32, %arg1 : i32, i32, i32
  }
  func.func @transform_1(%arg0: i32, %arg1: i32) -> (i32, i32, i32) {
    %c0_i32 = arith.constant 0 : i32
    %c0_i32_0 = arith.constant 0 : i32
    return %arg0, %c0_i32, %arg1 : i32, i32, i32
  }
  func.func @transform_2(%arg0: i32, %arg1: i32) -> (i32, i32, i32) {
    %c0_i32 = arith.constant 0 : i32
    %c0_i32_0 = arith.constant 0 : i32
    return %arg0, %c0_i32, %arg1 : i32, i32, i32
  }
  func.func @transform_3(%arg0: i32, %arg1: i32) -> (i32, i32) {
    %c0_i32 = arith.constant 0 : i32
    %c0_i32_0 = arith.constant 0 : i32
    %c0_i32_1 = arith.constant 0 : i32
    return %c0_i32, %c0_i32_0 : i32, i32
  }
  func.func @transform_4(%arg0: i32, %arg1: i32) -> (i32, i32, i32) {
    %c0_i32 = arith.constant 0 : i32
    %c0_i32_0 = arith.constant 0 : i32
    %c0_i32_1 = arith.constant 0 : i32
    %c0_i32_2 = arith.constant 0 : i32
    return %c0_i32, %c0_i32_0, %c0_i32_1 : i32, i32, i32
  }
  func.func @transform_5(%arg0: i32, %arg1: i32) -> (i32, i32, i32) {
    %c0_i32 = arith.constant 0 : i32
    %c0_i32_0 = arith.constant 0 : i32
    %c0_i32_1 = arith.constant 0 : i32
    %c0_i32_2 = arith.constant 0 : i32
    return %c0_i32, %c0_i32_0, %c0_i32_1 : i32, i32, i32
  }
  func.func @transform_6(%arg0: i32, %arg1: i32) -> (i32, i32) {
    %c0_i32 = arith.constant 0 : i32
    %c0_i32_0 = arith.constant 0 : i32
    %c0_i32_1 = arith.constant 0 : i32
    return %c0_i32, %c0_i32_0 : i32, i32
  }
  func.func @transform_7(%arg0: i32, %arg1: i32) -> (i32, i32, i32) {
    %c0_i32 = arith.constant 0 : i32
    %c0_i32_0 = arith.constant 0 : i32
    return %arg0, %c0_i32, %arg1 : i32, i32, i32
  }
}

</mosaic_0001>

<llo_original>
// kernel: tpu_custom_call.1
$region0: #{tpu_custom_call.1}
  #allocation0 [shape = 'u32[]', space=smem, size = 0x4, offset = 0x4, fixed_abs, tag = 'smem constant byte address 0x4 - core index']
  #allocation1 [shape = 'u32[144,128]{1,0:T(1,128)}', space=vmem, size = 0x12000, scoped, tag = 'internal scratch']
  %s0 = inlined_call_operand.vmem [shape: f32[2,8,384], index: 0, kind: input, shape index: {}]
  %s1 = inlined_call_operand.vmem [shape: f32[2,3,384], index: 1, kind: input, shape index: {}]
  %s2 = inlined_call_operand.vmem [shape: f32[2,11,48], index: 2, kind: input, shape index: {}]
  %s3 = inlined_call_operand.vmem [shape: bf16[48,384], index: 3, kind: input, shape index: {}]
  %s4 = inlined_call_operand.vmem [shape: f32[4,16,17], index: 4, kind: input, shape index: {}]
  %s5 = inlined_call_operand.vmem [shape: bf16[2,64,8], index: 5, kind: input, shape index: {}]
  %s6 = inlined_call_operand.vmem [shape: f32[16,1], index: 6, kind: input, shape index: {}]
  %s7 = inlined_call_operand.hbm [shape: bf16[2,16,384], index: 7, kind: output, shape index: {}]
  %s8 = sld [smem:[#allocation0]]
  $region61: #{tpu_custom_call.1} parent=0
    _
  %s10 = ssub.s32 1, %s8
  %s11 = scalar_select 0, %s10, %s8
  $region1: #{tpu_custom_call.1} parent=0
    #allocation2 [shape = 'u8[24576]{0}', space=vmem, size = 0x6000, scoped, tag = 'output window, operand 0']
    #allocation3 [shape = 's32[2]{0}', space=sflag, size = 0x8, scoped, tag = 'scoped memory for tpu_custom_call.1']
    %12 = vsyncpa [#allocation3], 0
    %s13 = scalar_lea.sflag [#allocation3], 1
    %14 = vsyncpa %s13, 0
    loop: start=0, step=1, limit=4
    $region2: #{tpu_custom_call.1} parent=1 // loop_pre_header
      _
    $region3: #{tpu_custom_call.1} parent=1 // loop_header
      %s16 = sphi 0, %s20
      %p17 = scmp.ge.s32.totalorder %s16, 4
      %s23 = sphi 0, %s35
      %s24 = sphi 0, %s31
      %s25 = sphi 0, %s23
      %s26 = sphi 0, %s24
      %s27 = sphi 0, %s25
      %s28 = sphi 0, %s26
      %s40 = sphi 0, %s42
      %s43 = sphi 0, %s40
      %s44 = sphi 0, %s43
      %s60 = sphi 0, %s44
      %s68 = sphi 0, %s70
      %s71 = sphi 0, %s68
      %s72 = sphi 0, %s71
      %s88 = sphi 0, %s72
      %s96 = sphi 0, %s98
      %s99 = sphi 0, %s96
      %s100 = sphi 0, %s99
      %s116 = sphi 0, %s100
      %s120 = sphi 0, %s120
      %s122 = sphi 0, %s120
      %s123 = sphi 0, %s122
      %s137 = sphi 0, %s123
      %s141 = sphi 0, %s141
      %s143 = sphi 0, %s141
      %s144 = sphi 0, %s143
      %s158 = sphi 0, %s144
      %s162 = sphi 0, %s162
      %s164 = sphi 0, %s162
      %s165 = sphi 0, %s164
      %s179 = sphi 0, %s165
      %s183 = sphi 0, %s183
      %s185 = sphi 0, %s183
      %s186 = sphi 0, %s185
      %s200 = sphi 0, %s186
      %s208 = sphi 0, %s210
      %s211 = sphi 0, %s208
      %s212 = sphi 0, %s211
      %s228 = sphi 0, %s212
    $region4: #{tpu_custom_call.1} parent=1 // loop_header_branch
      %19 = sbr.rel (%p17) target = $region8
    $region5: #{tpu_custom_call.1} parent=1 // loop_body
      %s21 = ssub.s32 %s16, 1
      %s22 = ssub.s32 %s16, 2
      %s29 = sadd.s32 1, %s24
      %p30 = scmp.ge.s32.totalorder %s29, 1
      %s31 = scalar_select %p30, 0, %s29
      %s32 = sadd.s32 1, %s23
      %s33 = scalar_select %p30, %s32, %s23
      %p34 = scmp.ge.s32.totalorder %s33, 2
      %s35 = scalar_select %p34, 0, %s33
      %s36 = ssub.s32 %s23, %s35
      %s37 = ssub.s32 %s24, %s31
      %s38 = sor.u32 %s36, %s37
      %p39 = scmp.eq.s32.totalorder %s38, 0
      %s41 = sadd.s32 %s40, 1
      %s42 = scalar_select %p39, %s40, %s41
      %p45 = pneg %p39
      %p46 = scmp.eq.s32.totalorder %s16, 1
      %p47 = por %p45, %p46
      %p48 = scmp.ne.s32.totalorder %s40, %s43
      %p49 = scmp.eq.s32.totalorder %s16, 0
      %p50 = por %p48, %p49
      %p51 = scmp.ne.s32.totalorder %s40, %s43
      %p52 = scmp.eq.s32.totalorder %s21, 1
      %p53 = por %p51, %p52
      %p54 = scmp.ne.s32.totalorder %s43, %s44
      %p55 = scmp.eq.s32.totalorder %s21, 0
      %p56 = por %p54, %p55
      %p57 = scmp.ne.s32.totalorder %s43, %s44
      %p58 = scmp.eq.s32.totalorder %s22, 1
      %p59 = por %p57, %p58
      %p61 = scmp.ne.s32.totalorder %s44, %s60
      %p62 = scmp.eq.s32.totalorder %s22, 0
      %p63 = por %p61, %p62
      %s64 = ssub.s32 %s23, %s35
      %s65 = ssub.s32 %s24, %s31
      %s66 = sor.u32 %s64, %s65
      %p67 = scmp.eq.s32.totalorder %s66, 0
      %s69 = sadd.s32 %s68, 1
      %s70 = scalar_select %p67, %s68, %s69
      %p73 = pneg %p67
      %p74 = scmp.eq.s32.totalorder %s16, 1
      %p75 = por %p73, %p74
      %p76 = scmp.ne.s32.totalorder %s68, %s71
      %p77 = scmp.eq.s32.totalorder %s16, 0
      %p78 = por %p76, %p77
      %p79 = scmp.ne.s32.totalorder %s68, %s71
      %p80 = scmp.eq.s32.totalorder %s21, 1
      %p81 = por %p79, %p80
      %p82 = scmp.ne.s32.totalorder %s71, %s72
      %p83 = scmp.eq.s32.totalorder %s21, 0
      %p84 = por %p82, %p83
      %p85 = scmp.ne.s32.totalorder %s71, %s72
      %p86 = scmp.eq.s32.totalorder %s22, 1
      %p87 = por %p85, %p86
      %p89 = scmp.ne.s32.totalorder %s72, %s88
      %p90 = scmp.eq.s32.totalorder %s22, 0
      %p91 = por %p89, %p90
      %s92 = ssub.s32 %s23, %s35
      %s93 = ssub.s32 %s24, %s31
      %s94 = sor.u32 %s92, %s93
      %p95 = scmp.eq.s32.totalorder %s94, 0
      %s97 = sadd.s32 %s96, 1
      %s98 = scalar_select %p95, %s96, %s97
      %p101 = pneg %p95
      %p102 = scmp.eq.s32.totalorder %s16, 1
      %p103 = por %p101, %p102
      %p104 = scmp.ne.s32.totalorder %s96, %s99
      %p105 = scmp.eq.s32.totalorder %s16, 0
      %p106 = por %p104, %p105
      %p107 = scmp.ne.s32.totalorder %s96, %s99
      %p108 = scmp.eq.s32.totalorder %s21, 1
      %p109 = por %p107, %p108
      %p110 = scmp.ne.s32.totalorder %s99, %s100
      %p111 = scmp.eq.s32.totalorder %s21, 0
      %p112 = por %p110, %p111
      %p113 = scmp.ne.s32.totalorder %s99, %s100
      %p114 = scmp.eq.s32.totalorder %s22, 1
      %p115 = por %p113, %p114
      %p117 = scmp.ne.s32.totalorder %s100, %s116
      %p118 = scmp.eq.s32.totalorder %s22, 0
      %p119 = por %p117, %p118
      %s121 = sadd.s32 %s120, 1
      %p124 = scmp.eq.s32.totalorder %s16, 1
      %p125 = scmp.ne.s32.totalorder %s120, %s122
      %p126 = scmp.eq.s32.totalorder %s16, 0
      %p127 = por %p125, %p126
      %p128 = scmp.ne.s32.totalorder %s120, %s122
      %p129 = scmp.eq.s32.totalorder %s21, 1
      %p130 = por %p128, %p129
      %p131 = scmp.ne.s32.totalorder %s122, %s123
      %p132 = scmp.eq.s32.totalorder %s21, 0
      %p133 = por %p131, %p132
      %p134 = scmp.ne.s32.totalorder %s122, %s123
      %p135 = scmp.eq.s32.totalorder %s22, 1
      %p136 = por %p134, %p135
      %p138 = scmp.ne.s32.totalorder %s123, %s137
      %p139 = scmp.eq.s32.totalorder %s22, 0
      %p140 = por %p138, %p139
      %s142 = sadd.s32 %s141, 1
      %p145 = scmp.eq.s32.totalorder %s16, 1
      %p146 = scmp.ne.s32.totalorder %s141, %s143
      %p147 = scmp.eq.s32.totalorder %s16, 0
      %p148 = por %p146, %p147
      %p149 = scmp.ne.s32.totalorder %s141, %s143
      %p150 = scmp.eq.s32.totalorder %s21, 1
      %p151 = por %p149, %p150
      %p152 = scmp.ne.s32.totalorder %s143, %s144
      %p153 = scmp.eq.s32.totalorder %s21, 0
      %p154 = por %p152, %p153
      %p155 = scmp.ne.s32.totalorder %s143, %s144
      %p156 = scmp.eq.s32.totalorder %s22, 1
      %p157 = por %p155, %p156
      %p159 = scmp.ne.s32.totalorder %s144, %s158
      %p160 = scmp.eq.s32.totalorder %s22, 0
      %p161 = por %p159, %p160
      %s163 = sadd.s32 %s162, 1
      %p166 = scmp.eq.s32.totalorder %s16, 1
      %p167 = scmp.ne.s32.totalorder %s162, %s164
      %p168 = scmp.eq.s32.totalorder %s16, 0
      %p169 = por %p167, %p168
      %p170 = scmp.ne.s32.totalorder %s162, %s164
      %p171 = scmp.eq.s32.totalorder %s21, 1
      %p172 = por %p170, %p171
      %p173 = scmp.ne.s32.totalorder %s164, %s165
      %p174 = scmp.eq.s32.totalorder %s21, 0
      %p175 = por %p173, %p174
      %p176 = scmp.ne.s32.totalorder %s164, %s165
      %p177 = scmp.eq.s32.totalorder %s22, 1
      %p178 = por %p176, %p177
      %p180 = scmp.ne.s32.totalorder %s165, %s179
      %p181 = scmp.eq.s32.totalorder %s22, 0
      %p182 = por %p180, %p181
      %s184 = sadd.s32 %s183, 1
      %p187 = scmp.eq.s32.totalorder %s16, 1
      %p188 = scmp.ne.s32.totalorder %s183, %s185
      %p189 = scmp.eq.s32.totalorder %s16, 0
      %p190 = por %p188, %p189
      %p191 = scmp.ne.s32.totalorder %s183, %s185
      %p192 = scmp.eq.s32.totalorder %s21, 1
      %p193 = por %p191, %p192
      %p194 = scmp.ne.s32.totalorder %s185, %s186
      %p195 = scmp.eq.s32.totalorder %s21, 0
      %p196 = por %p194, %p195
      %p197 = scmp.ne.s32.totalorder %s185, %s186
      %p198 = scmp.eq.s32.totalorder %s22, 1
      %p199 = por %p197, %p198
      %p201 = scmp.ne.s32.totalorder %s186, %s200
      %p202 = scmp.eq.s32.totalorder %s22, 0
      %p203 = por %p201, %p202
      %s204 = ssub.s32 %s23, %s35
      %s205 = ssub.s32 %s24, %s31
      %s206 = sor.u32 %s204, %s205
      %p207 = scmp.eq.s32.totalorder %s206, 0
      %s209 = sadd.s32 %s208, 1
      %s210 = scalar_select %p207, %s208, %s209
      %p213 = pneg %p207
      %p214 = scmp.eq.s32.totalorder %s16, 1
      %p215 = por %p213, %p214
      %p216 = scmp.ne.s32.totalorder %s208, %s211
      %p217 = scmp.eq.s32.totalorder %s16, 0
      %p218 = por %p216, %p217
      %p219 = scmp.ne.s32.totalorder %s208, %s211
      %p220 = scmp.eq.s32.totalorder %s21, 1
      %p221 = por %p219, %p220
      %p222 = scmp.ne.s32.totalorder %s211, %s212
      %p223 = scmp.eq.s32.totalorder %s21, 0
      %p224 = por %p222, %p223
      %p225 = scmp.ne.s32.totalorder %s211, %s212
      %p226 = scmp.eq.s32.totalorder %s22, 1
      %p227 = por %p225, %p226
      %p229 = scmp.ne.s32.totalorder %s212, %s228
      %p230 = scmp.eq.s32.totalorder %s22, 0
      %p231 = por %p229, %p230
      %p232 = scmp.le.s32.totalorder 1, %s16
      %p233 = scmp.lt.s32.totalorder %s16, 3
      %p234 = pnand %p232, %p233
      %p235 = pneg %p234
      // Predicated region
      $region9: #{tpu_custom_call.1} parent=5 // pred_check
        _
      $region10: #{tpu_custom_call.1} parent=5 // pred_check_branch
        %237 = sbr.rel (%p234) target = $region12
      $region11: #{tpu_custom_call.1} parent=5 // pred_region
        %s238 = ssub.s32 %s16, 1
        // Predicated region
        $region13: #{tpu_custom_call.1} parent=11 // pred_check
          %p239 = pneg %p133
        $region14: #{tpu_custom_call.1} parent=11 // pred_check_branch
          %241 = sbr.rel (%p239) target = $region16
        $region15: #{tpu_custom_call.1} parent=11 // pred_region
          _
        $region16: #{tpu_custom_call.1} parent=11 // pred_fallthru
          _
        // Predicated region
        $region17: #{tpu_custom_call.1} parent=11 // pred_check
          %p242 = pneg %p154
        $region18: #{tpu_custom_call.1} parent=11 // pred_check_branch
          %244 = sbr.rel (%p242) target = $region20
        $region19: #{tpu_custom_call.1} parent=11 // pred_region
          _
        $region20: #{tpu_custom_call.1} parent=11 // pred_fallthru
          _
        // Predicated region
        $region21: #{tpu_custom_call.1} parent=11 // pred_check
          %p245 = pneg %p175
        $region22: #{tpu_custom_call.1} parent=11 // pred_check_branch
          %247 = sbr.rel (%p245) target = $region24
        $region23: #{tpu_custom_call.1} parent=11 // pred_region
          _
        $region24: #{tpu_custom_call.1} parent=11 // pred_fallthru
          _
        // Predicated region
        $region25: #{tpu_custom_call.1} parent=11 // pred_check
          %p248 = pneg %p196
        $region26: #{tpu_custom_call.1} parent=11 // pred_check_branch
          %250 = sbr.rel (%p248) target = $region28
        $region27: #{tpu_custom_call.1} parent=11 // pred_region
          _
        $region28: #{tpu_custom_call.1} parent=11 // pred_fallthru
          _
      $region12: #{tpu_custom_call.1} parent=5 // pred_fallthru
        _
      %p251 = scmp.lt.s32.totalorder %s16, 2
      // Predicated region
      $region29: #{tpu_custom_call.1} parent=5 // pred_check
        %p252 = pneg %p251
      $region30: #{tpu_custom_call.1} parent=5 // pred_check_branch
        %254 = sbr.rel (%p252) target = $region32
      $region31: #{tpu_custom_call.1} parent=5 // pred_region
        // Predicated region
        $region33: #{tpu_custom_call.1} parent=31 // pred_check
          %p255 = pneg %p50
        $region34: #{tpu_custom_call.1} parent=31 // pred_check_branch
          %257 = sbr.rel (%p255) target = $region36
        $region35: #{tpu_custom_call.1} parent=31 // pred_region
          %s258 = smul.u32 3, %s24
          %p259 = scmp.lt.s32.totalorder %s23, 1
          %s260 = scalar_select %p259, %s23, 1
          %p261 = scmp.lt.s32.totalorder %s258, 2
          %s262 = scalar_select %p261, %s258, 2
          %s263 = smul.addr %s260, 3
          %s264 = sadd.s32 %s262, %s263
          %s265 = smul.addr %s264, 8
          %s266 = scalar_lea.vmem %s0, %s265
          %s267 = smul.u32 3, %s24
        $region36: #{tpu_custom_call.1} parent=31 // pred_fallthru
          _
        // Predicated region
        $region37: #{tpu_custom_call.1} parent=31 // pred_check
          %p268 = pneg %p78
        $region38: #{tpu_custom_call.1} parent=31 // pred_check_branch
          %270 = sbr.rel (%p268) target = $region40
        $region39: #{tpu_custom_call.1} parent=31 // pred_region
          %s271 = smul.u32 3, %s24
          %p272 = scmp.lt.s32.totalorder %s23, 1
          %s273 = scalar_select %p272, %s23, 1
          %p274 = scmp.lt.s32.totalorder %s271, 2
          %s275 = scalar_select %p274, %s271, 2
          %s276 = smul.addr %s273, 3
          %s277 = sadd.s32 %s275, %s276
          %s278 = smul.addr %s277, 4
          %s279 = scalar_lea.vmem %s1, %s278
          %s280 = smul.u32 3, %s24
        $region40: #{tpu_custom_call.1} parent=31 // pred_fallthru
          _
        // Predicated region
        $region41: #{tpu_custom_call.1} parent=31 // pred_check
          %p281 = pneg %p106
        $region42: #{tpu_custom_call.1} parent=31 // pred_check_branch
          %283 = sbr.rel (%p281) target = $region44
        $region43: #{tpu_custom_call.1} parent=31 // pred_region
          %p284 = scmp.lt.s32.totalorder %s23, 1
          %s285 = scalar_select %p284, %s23, 1
          %p286 = scmp.lt.s32.totalorder %s24, 0
          %s287 = scalar_select %p286, %s24, 0
          %s288 = smul.addr %s285, 2
          %s289 = sadd.s32 %s287, %s288
          %s290 = smul.addr %s289, 8
          %s291 = scalar_lea.vmem %s2, %s290
        $region44: #{tpu_custom_call.1} parent=31 // pred_fallthru
          _
      $region32: #{tpu_custom_call.1} parent=5 // pred_fallthru
        _
      %p292 = scmp.le.s32.totalorder 1, %s16
      %p293 = scmp.lt.s32.totalorder %s16, 3
      %p294 = pnand %p292, %p293
      %p295 = pneg %p294
      // Predicated region
      $region45: #{tpu_custom_call.1} parent=5 // pred_check
        _
      $region46: #{tpu_custom_call.1} parent=5 // pred_check_branch
        %297 = sbr.rel (%p294) target = $region48
      $region47: #{tpu_custom_call.1} parent=5 // pred_region
        %s298 = ssub.s32 %s16, 1
        %s299 = smul.u32 3, %s26
        %p300 = scmp.lt.s32.totalorder %s25, 1
        %s301 = scalar_select %p300, %s25, 1
        %p302 = scmp.lt.s32.totalorder %s299, 2
        %s303 = scalar_select %p302, %s299, 2
        %s304 = smul.addr %s301, 3
        %s305 = sadd.s32 %s303, %s304
        %s306 = smul.addr %s305, 8
        %s307 = scalar_lea.vmem %s0, %s306
        %p308 = pneg %p56
        %p309 = pneg %p53
        %s310 = smul.u32 3, %s26
        %p311 = scmp.lt.s32.totalorder %s25, 1
        %s312 = scalar_select %p311, %s25, 1
        %p313 = scmp.lt.s32.totalorder %s310, 2
        %s314 = scalar_select %p313, %s310, 2
        %s315 = smul.addr %s312, 3
        %s316 = sadd.s32 %s314, %s315
        %s317 = smul.addr %s316, 4
        %s318 = scalar_lea.vmem %s1, %s317
        %p319 = pneg %p84
        %p320 = pneg %p81
        %p321 = scmp.lt.s32.totalorder %s25, 1
        %s322 = scalar_select %p321, %s25, 1
        %p323 = scmp.lt.s32.totalorder %s26, 0
        %s324 = scalar_select %p323, %s26, 0
        %s325 = smul.addr %s322, 2
        %s326 = sadd.s32 %s324, %s325
        %s327 = smul.addr %s326, 8
        %s328 = scalar_lea.vmem %s2, %s327
        %p329 = pneg %p112
        %p330 = pneg %p109
        %p331 = pneg %p133
        %p332 = pneg %p130
        %p333 = pneg %p154
        %p334 = pneg %p151
        %p335 = pneg %p175
        %p336 = pneg %p172
        %p337 = pneg %p196
        %p338 = pneg %p193
        %p339 = pneg %p224
        %p340 = pneg %p221
        %s341 = sand.u32 %s211, 1
        %s342 = scalar_lea.sflag [#allocation3], %s341
        %s343 = sand.u32 %s211, 1
        %s344 = smul.addr %s343, 24
        %s345 = scalar_lea.vmem [#allocation2], %s344
        %s346 = smul.u32 3, %s26
        %p347 = scmp.lt.s32.totalorder %s25, 1
        %s348 = scalar_select %p347, %s25, 1
        %p349 = scmp.lt.s32.totalorder %s346, 2
        %s350 = scalar_select %p349, %s346, 2
        %s351 = smul.addr %s348, 3
        %s352 = sadd.s32 %s350, %s351
        %s353 = smul.addr %s352, 8
        %s354 = scalar_lea.vmem %s0, %s353
        %s355 = smul.u32 3, %s26
        %s356 = smul.u32 3, %s26
        %p357 = scmp.lt.s32.totalorder %s25, 1
        %s358 = scalar_select %p357, %s25, 1
        %p359 = scmp.lt.s32.totalorder %s356, 2
        %s360 = scalar_select %p359, %s356, 2
        %s361 = smul.addr %s358, 3
        %s362 = sadd.s32 %s360, %s361
        %s363 = smul.addr %s362, 4
        %s364 = scalar_lea.vmem %s1, %s363
        %s365 = smul.u32 3, %s26
        %p366 = scmp.lt.s32.totalorder %s25, 1
        %s367 = scalar_select %p366, %s25, 1
        %p368 = scmp.lt.s32.totalorder %s26, 0
        %s369 = scalar_select %p368, %s26, 0
        %s370 = smul.addr %s367, 2
        %s371 = sadd.s32 %s369, %s370
        %s372 = smul.addr %s371, 8
        %s373 = scalar_lea.vmem %s2, %s372
        %s374 = smul.u32 3, %s26
        %v376 = vld [vmem:[%s354] sm:$0xff]
        %v377 = vld [vmem:[%s354 + $0x8] sm:$0xff]
        %v378 = vld [vmem:[%s354 + $0x10] sm:$0xff]
        %v379 = vpack.c.bf16 %v376, %v376
        %v380 = vpack.c.bf16 %v377, %v377
        %v381 = vpack.c.bf16 %v378, %v378
        %v382 = vld [vmem:[%s364] sm:$0x77]
        %v383 = vld [vmem:[%s364 + $0x8] sm:$0x7]
        %v384 = vld [vmem:[%s373] sm:$0xff]
        %v385 = vld [vmem:[%s373 + $0x8] sm:$0x7]
        %v386 = vpack.c.bf16 %v385, %v384
        %v387 = vld [vmem:[%s3] sm:$0xff]
        %v388 = vld [vmem:[%s3 + $0x8] sm:$0xf]
        %v389 = vld [vmem:[%s3 + $0xc] sm:$0xff]
        %v390 = vld [vmem:[%s3 + $0x14] sm:$0xf]
        %v391 = vld [vmem:[%s3 + $0x18] sm:$0xff]
        %v392 = vld [vmem:[%s3 + $0x20] sm:$0xf]
        %v393 = vld [vmem:[%s3 + $0x24] sm:$0xff]
        %v394 = vld [vmem:[%s3 + $0x2c] sm:$0xf]
        %v395 = vld [vmem:[%s3 + $0x30] sm:$0xff]
        %v396 = vld [vmem:[%s3 + $0x38] sm:$0xf]
        %v397 = vld [vmem:[%s3 + $0x3c] sm:$0xff]
        %v398 = vld [vmem:[%s3 + $0x44] sm:$0xf]
        %v411 = vunpack.c.l.b16 %v387
        %v412 = vunpack.c.h.b16 %v387
        %v413 = vunpack.c.l.b16 %v388
        %v414 = vunpack.c.l.b16 %v389
        %v415 = vunpack.c.h.b16 %v389
        %v416 = vunpack.c.l.b16 %v390
        %v417 = vunpack.c.l.b16 %v391
        %v418 = vunpack.c.h.b16 %v391
        %v419 = vunpack.c.l.b16 %v392
        %v420 = vunpack.c.l.b16 %v393
        %v421 = vunpack.c.h.b16 %v393
        %v422 = vunpack.c.l.b16 %v394
        %v423 = vunpack.c.l.b16 %v395
        %v424 = vunpack.c.h.b16 %v395
        %v425 = vunpack.c.l.b16 %v396
        %v426 = vunpack.c.l.b16 %v397
        %v427 = vunpack.c.h.b16 %v397
        %v428 = vunpack.c.l.b16 %v398
        %v429 = vpack.c.b16 %v414, %v411
        %v430 = vpack.c.b16 %v415, %v412
        %v431 = vpack.c.b16 %v416, %v413
        %v432 = vpack.c.b16 %v420, %v417
        %v433 = vpack.c.b16 %v421, %v418
        %v434 = vpack.c.b16 %v422, %v419
        %v435 = vpack.c.b16 %v426, %v423
        %v436 = vpack.c.b16 %v427, %v424
        %v437 = vpack.c.b16 %v428, %v425
        %vm447 = vcmask 392192
        %v449 = vsel %vm447, %v386, 0
        %451 = vmatprep.subr.bf16.mxu0 0
        %452 = vmatpush1.bf16.msra.mxu0 0
        %453 = vmatprep.subr.bf16.mxu0 0
        %454 = vmatpush1.bf16.msra.mxu0 0
        %455 = vmatprep.subr.bf16.mxu0 0
        %456 = vmatpush1.bf16.msra.mxu0 0
        %457 = vmatprep.subr.bf16.mxu0 0
        %458 = vmatpush1.bf16.msra.mxu0 0
        %459 = vmatprep.subr.bf16.mxu0 0
        %460 = vmatpush1.bf16.msra.mxu0 0
        %461 = vmatprep.subr.bf16.mxu0 %v436
        %462 = vmatpush1.bf16.msra.mxu0 %v435
        %463 = vmatprep.subr.bf16.mxu0 %v433
        %464 = vmatpush1.bf16.msra.mxu0 %v432
        %465 = vmatprep.subr.bf16.mxu0 %v430
        %466 = vmatpush1.bf16.msra.mxu0 %v429
        %467 = vmatprep.subr.bf16.mxu0 0
        %468 = vmatpush2.bf16.msra.mxu0 0
        %469 = vmatprep.subr.bf16.mxu0 0
        %470 = vmatpush2.bf16.msra.mxu0 0
        %471 = vmatprep.subr.bf16.mxu0 0
        %472 = vmatpush2.bf16.msra.mxu0 0
        %473 = vmatprep.subr.bf16.mxu0 0
        %474 = vmatpush2.bf16.msra.mxu0 0
        %475 = vmatprep.subr.bf16.mxu0 0
        %476 = vmatpush2.bf16.msra.mxu0 0
        %477 = vmatprep.subr.bf16.mxu0 0
        %478 = vmatpush2.bf16.msra.mxu0 0
        %479 = vmatprep.subr.bf16.mxu0 0
        %480 = vmatpush2.bf16.msra.mxu0 0
        %481 = vmatprep.subr.bf16.mxu0 0
        %482 = vmatpush2.bf16.msra.mxu0 0
        %483 = vmatprep.mubr.bf16.mxu0 0
        %484 = vmatmul.mubr.bf16.gmra.mxu0 %v449
        %v485 = vpop.f32.mrf.mxu0
        %v486 = vadd.f32 0.0, %v485
        %v487 = vpop.f32.mrf.mxu0
        %v488 = vadd.f32 0.0, %v487
        %v489 = vpop.f32.mrf.mxu0
        %v490 = vadd.f32 0.0, %v489
        %v491 = vpop.f32.mrf.mxu0
        %v492 = vadd.f32 0.0, %v491
        %493 = vdwg.mxu0
        %494 = vmatprep.subr.bf16.mxu0 0
        %495 = vmatpush1.bf16.msra.mxu0 0
        %496 = vmatprep.subr.bf16.mxu0 0
        %497 = vmatpush1.bf16.msra.mxu0 0
        %498 = vmatprep.subr.bf16.mxu0 0
        %499 = vmatpush1.bf16.msra.mxu0 0
        %500 = vmatprep.subr.bf16.mxu0 0
        %501 = vmatpush1.bf16.msra.mxu0 0
        %502 = vmatprep.subr.bf16.mxu0 0
        %503 = vmatpush1.bf16.msra.mxu0 0
        %504 = vmatprep.subr.bf16.mxu0 0
        %505 = vmatpush1.bf16.msra.mxu0 %v437
        %506 = vmatprep.subr.bf16.mxu0 0
        %507 = vmatpush1.bf16.msra.mxu0 %v434
        %508 = vmatprep.subr.bf16.mxu0 0
        %509 = vmatpush1.bf16.msra.mxu0 %v431
        %510 = vmatprep.subr.bf16.mxu0 0
        %511 = vmatpush2.bf16.msra.mxu0 0
        %512 = vmatprep.subr.bf16.mxu0 0
        %513 = vmatpush2.bf16.msra.mxu0 0
        %514 = vmatprep.subr.bf16.mxu0 0
        %515 = vmatpush2.bf16.msra.mxu0 0
        %516 = vmatprep.subr.bf16.mxu0 0
        %517 = vmatpush2.bf16.msra.mxu0 0
        %518 = vmatprep.subr.bf16.mxu0 0
        %519 = vmatpush2.bf16.msra.mxu0 0
        %520 = vmatprep.subr.bf16.mxu0 0
        %521 = vmatpush2.bf16.msra.mxu0 0
        %522 = vmatprep.subr.bf16.mxu0 0
        %523 = vmatpush2.bf16.msra.mxu0 0
        %524 = vmatprep.subr.bf16.mxu0 0
        %525 = vmatpush2.bf16.msra.mxu0 0
        %526 = vmatprep.mubr.bf16.mxu0 0
        %527 = vmatmul.mubr.bf16.gmra.mxu0 %v449
        %v528 = vpop.f32.mrf.mxu0
        %v529 = vadd.f32 0.0, %v528
        %v530 = vpop.f32.mrf.mxu0
        %v531 = vpop.f32.mrf.mxu0
        %v532 = vadd.f32 0.0, %v531
        %v533 = vpop.f32.mrf.mxu0
        %534 = vdwg.mxu0
        %v537 = vcombine.low %v490, %v492
        %v539 = vsub.f32 %v382, %v537
        %v540 = vsub.f32 %v383, %v532
        %v541 = vmul.f32 %v539, %v539
        %v542 = vmul.f32 %v540, %v540
        %v544 = vcombine.high %v541, %v541
        %vm546 = vcmask 1042432
        %v547 = vsel %vm546, %v541, 0.0
        %v548 = vrot.slane %v547, 4
        %v549 = vadd.f32 %v547, %v548
        %v550 = vrot.slane %v549, 2
        %v551 = vadd.f32 %v549, %v550
        %v552 = vrot.slane %v551, 1
        %v553 = vadd.f32 %v551, %v552
        %v554 = vsel %vm546, %v544, 0.0
        %v555 = vrot.slane %v554, 4
        %v556 = vadd.f32 %v554, %v555
        %v557 = vrot.slane %v556, 2
        %v558 = vadd.f32 %v556, %v557
        %v559 = vrot.slane %v558, 1
        %v560 = vadd.f32 %v558, %v559
        %v561 = vsel %vm546, %v542, 0.0
        %v562 = vrot.slane %v561, 4
        %v563 = vadd.f32 %v561, %v562
        %v564 = vrot.slane %v563, 2
        %v565 = vadd.f32 %v563, %v564
        %v566 = vrot.slane %v565, 1
        %v567 = vadd.f32 %v565, %v566
        %v568 = vrsqrt.pop %v553
        %v569 = vmul.f32 %v553, %v568
        %vm570 = vcmp.eq.f32.partialorder %v553, inf
        %v571 = vsel %vm570, %v553, %v569
        %vm572 = vcmp.eq.f32.partialorder %v553, 0.0
        %v573 = vand.u32 %v553, 2147483648
        %v574 = vsel %vm572, %v573, %v571
        %v575 = vrsqrt.pop %v560
        %v576 = vmul.f32 %v560, %v575
        %vm577 = vcmp.eq.f32.partialorder %v560, inf
        %v578 = vsel %vm577, %v560, %v576
        %vm579 = vcmp.eq.f32.partialorder %v560, 0.0
        %v580 = vand.u32 %v560, 2147483648
        %v581 = vsel %vm579, %v580, %v578
        %v582 = vrsqrt.pop %v567
        %v583 = vmul.f32 %v567, %v582
        %vm584 = vcmp.eq.f32.partialorder %v567, inf
        %v585 = vsel %vm584, %v567, %v583
        %vm586 = vcmp.eq.f32.partialorder %v567, 0.0
        %v587 = vand.u32 %v567, 2147483648
        %v588 = vsel %vm586, %v587, %v585
        %v589 = vld [vmem:[%s4] sm:$0xff]
        %v590 = vld [vmem:[%s4 + $0x8] sm:$0xff]
        %592 = vset.pattern.permute.xlu0 0
        %593 = vperm.xlu0 %592, %v589
        %v594 = vpop.permute.xlu0 %593
        %597 = vset.pattern.permute.xlu0 0
        %598 = vperm.xlu0 %597, %v590
        %v599 = vpop.permute.xlu0 %598
        %v601 = vlaneseq
        %v602 = vshrl.u32 %v601, 7
        %v603 = vsub.s32 0, %v602
        %v604 = vrot.slane %v490, %v603
        %v605 = vlaneseq
        %v606 = vshrl.u32 %v605, 7
        %v607 = vsub.s32 0, %v606
        %v608 = vrot.slane %v492, %v607
        %v609 = vlaneseq
        %v610 = vshrl.u32 %v609, 7
        %v611 = vsub.s32 0, %v610
        %v612 = vrot.slane %v532, %v611
        %v613 = vmul.f32 %v594, %v604
        %v614 = vmul.f32 %v594, %v608
        %v615 = vmul.f32 %v594, %v612
        %v616 = vmul.f32 %v599, %v604
        %v617 = vmul.f32 %v599, %v608
        %v618 = vmul.f32 %v599, %v612
        %619 = vset.pattern.permute.xlu0 1
        %620 = vperm.xlu0 %619, %v589
        %v621 = vpop.permute.xlu0 %620
        %623 = vset.pattern.permute.xlu0 1
        %624 = vperm.xlu0 %623, %v590
        %v625 = vpop.permute.xlu0 %624
        %v627 = vlaneseq
        %v628 = vshrl.u32 %v627, 7
        %v629 = vsub.s32 1, %v628
        %v630 = vrot.slane %v490, %v629
        %v631 = vlaneseq
        %v632 = vshrl.u32 %v631, 7
        %v633 = vsub.s32 1, %v632
        %v634 = vrot.slane %v492, %v633
        %v635 = vlaneseq
        %v636 = vshrl.u32 %v635, 7
        %v637 = vsub.s32 1, %v636
        %v638 = vrot.slane %v532, %v637
        %v639 = vmul.f32 %v621, %v630
        %v640 = vmul.f32 %v621, %v634
        %v641 = vmul.f32 %v621, %v638
        %v642 = vmul.f32 %v625, %v630
        %v643 = vmul.f32 %v625, %v634
        %v644 = vmul.f32 %v625, %v638
        %v645 = vadd.f32 %v613, %v639
        %v646 = vadd.f32 %v614, %v640
        %v647 = vadd.f32 %v615, %v641
        %v648 = vadd.f32 %v616, %v642
        %v649 = vadd.f32 %v617, %v643
        %v650 = vadd.f32 %v618, %v644
        %651 = vset.pattern.permute.xlu0 2
        %652 = vperm.xlu0 %651, %v589
        %v653 = vpop.permute.xlu0 %652
        %655 = vset.pattern.permute.xlu0 2
        %656 = vperm.xlu0 %655, %v590
        %v657 = vpop.permute.xlu0 %656
        %v659 = vlaneseq
        %v660 = vshrl.u32 %v659, 7
        %v661 = vsub.s32 2, %v660
        %v662 = vrot.slane %v490, %v661
        %v663 = vlaneseq
        %v664 = vshrl.u32 %v663, 7
        %v665 = vsub.s32 2, %v664
        %v666 = vrot.slane %v492, %v665
        %v667 = vlaneseq
        %v668 = vshrl.u32 %v667, 7
        %v669 = vsub.s32 2, %v668
        %v670 = vrot.slane %v532, %v669
        %v671 = vmul.f32 %v653, %v662
        %v672 = vmul.f32 %v653, %v666
        %v673 = vmul.f32 %v653, %v670
        %v674 = vmul.f32 %v657, %v662
        %v675 = vmul.f32 %v657, %v666
        %v676 = vmul.f32 %v657, %v670
        %v677 = vadd.f32 %v645, %v671
        %v678 = vadd.f32 %v646, %v672
        %v679 = vadd.f32 %v647, %v673
        %v680 = vadd.f32 %v648, %v674
        %v681 = vadd.f32 %v649, %v675
        %v682 = vadd.f32 %v650, %v676
        %683 = vset.pattern.permute.xlu0 3
        %684 = vperm.xlu0 %683, %v589
        %v685 = vpop.permute.xlu0 %684
        %687 = vset.pattern.permute.xlu0 3
        %688 = vperm.xlu0 %687, %v590
        %v689 = vpop.permute.xlu0 %688
        %v693 = vlaneseq
        %v694 = vshrl.u32 %v693, 7
        %v695 = vsub.s32 0, %v694
        %v696 = vrot.slane %v539, %v695
        %v697 = vlaneseq
        %v698 = vshrl.u32 %v697, 7
        %v699 = vsub.s32 4, %v698
        %v700 = vrot.slane %v539, %v699
        %v701 = vlaneseq
        %v702 = vshrl.u32 %v701, 7
        %v703 = vsub.s32 0, %v702
        %v704 = vrot.slane %v540, %v703
        %v708 = vlaneseq
        %v709 = vshrl.u32 %v708, 7
        %v710 = vsub.s32 0, %v709
        %v711 = vrot.slane %v696, %v710
        %v712 = vlaneseq
        %v713 = vshrl.u32 %v712, 7
        %v714 = vsub.s32 0, %v713
        %v715 = vrot.slane %v700, %v714
        %v716 = vlaneseq
        %v717 = vshrl.u32 %v716, 7
        %v718 = vsub.s32 0, %v717
        %v719 = vrot.slane %v704, %v718
        %v720 = vmul.f32 %v685, %v711
        %v721 = vmul.f32 %v685, %v715
        %v722 = vmul.f32 %v685, %v719
        %v723 = vmul.f32 %v689, %v711
        %v724 = vmul.f32 %v689, %v715
        %v725 = vmul.f32 %v689, %v719
        %726 = vset.pattern.permute.xlu0 4
        %727 = vperm.xlu0 %726, %v589
        %v728 = vpop.permute.xlu0 %727
        %730 = vset.pattern.permute.xlu0 4
        %731 = vperm.xlu0 %730, %v590
        %v732 = vpop.permute.xlu0 %731
        %v734 = vlaneseq
        %v735 = vshrl.u32 %v734, 7
        %v736 = vsub.s32 1, %v735
        %v737 = vrot.slane %v539, %v736
        %v738 = vlaneseq
        %v739 = vshrl.u32 %v738, 7
        %v740 = vsub.s32 5, %v739
        %v741 = vrot.slane %v539, %v740
        %v742 = vlaneseq
        %v743 = vshrl.u32 %v742, 7
        %v744 = vsub.s32 1, %v743
        %v745 = vrot.slane %v540, %v744
        %v749 = vlaneseq
        %v750 = vshrl.u32 %v749, 7
        %v751 = vsub.s32 1, %v750
        %v752 = vrot.slane %v737, %v751
        %v753 = vlaneseq
        %v754 = vshrl.u32 %v753, 7
        %v755 = vsub.s32 1, %v754
        %v756 = vrot.slane %v741, %v755
        %v757 = vlaneseq
        %v758 = vshrl.u32 %v757, 7
        %v759 = vsub.s32 1, %v758
        %v760 = vrot.slane %v745, %v759
        %v761 = vmul.f32 %v728, %v752
        %v762 = vmul.f32 %v728, %v756
        %v763 = vmul.f32 %v728, %v760
        %v764 = vmul.f32 %v732, %v752
        %v765 = vmul.f32 %v732, %v756
        %v766 = vmul.f32 %v732, %v760
        %v767 = vadd.f32 %v720, %v761
        %v768 = vadd.f32 %v721, %v762
        %v769 = vadd.f32 %v722, %v763
        %v770 = vadd.f32 %v723, %v764
        %v771 = vadd.f32 %v724, %v765
        %v772 = vadd.f32 %v725, %v766
        %773 = vset.pattern.permute.xlu0 5
        %774 = vperm.xlu0 %773, %v589
        %v775 = vpop.permute.xlu0 %774
        %777 = vset.pattern.permute.xlu0 5
        %778 = vperm.xlu0 %777, %v590
        %v779 = vpop.permute.xlu0 %778
        %v781 = vlaneseq
        %v782 = vshrl.u32 %v781, 7
        %v783 = vsub.s32 2, %v782
        %v784 = vrot.slane %v539, %v783
        %v785 = vlaneseq
        %v786 = vshrl.u32 %v785, 7
        %v787 = vsub.s32 6, %v786
        %v788 = vrot.slane %v539, %v787
        %v789 = vlaneseq
        %v790 = vshrl.u32 %v789, 7
        %v791 = vsub.s32 2, %v790
        %v792 = vrot.slane %v540, %v791
        %v796 = vlaneseq
        %v797 = vshrl.u32 %v796, 7
        %v798 = vsub.s32 2, %v797
        %v799 = vrot.slane %v784, %v798
        %v800 = vlaneseq
        %v801 = vshrl.u32 %v800, 7
        %v802 = vsub.s32 2, %v801
        %v803 = vrot.slane %v788, %v802
        %v804 = vlaneseq
        %v805 = vshrl.u32 %v804, 7
        %v806 = vsub.s32 2, %v805
        %v807 = vrot.slane %v792, %v806
        %v808 = vmul.f32 %v775, %v799
        %v809 = vmul.f32 %v775, %v803
        %v810 = vmul.f32 %v775, %v807
        %v811 = vmul.f32 %v779, %v799
        %v812 = vmul.f32 %v779, %v803
        %v813 = vmul.f32 %v779, %v807
        %v814 = vadd.f32 %v767, %v808
        %v815 = vadd.f32 %v768, %v809
        %v816 = vadd.f32 %v769, %v810
        %v817 = vadd.f32 %v770, %v811
        %v818 = vadd.f32 %v771, %v812
        %v819 = vadd.f32 %v772, %v813
        %v820 = vadd.f32 %v677, %v814
        %v821 = vadd.f32 %v678, %v815
        %v822 = vadd.f32 %v679, %v816
        %v823 = vadd.f32 %v680, %v817
        %v824 = vadd.f32 %v681, %v818
        %v825 = vadd.f32 %v682, %v819
        %826 = vset.pattern.permute.xlu0 6
        %827 = vperm.xlu0 %826, %v589
        %v828 = vpop.permute.xlu0 %827
        %830 = vset.pattern.permute.xlu0 6
        %831 = vperm.xlu0 %830, %v590
        %v832 = vpop.permute.xlu0 %831
        %v834 = vmul.f32 %v828, %v574
        %v835 = vmul.f32 %v828, %v581
        %v836 = vmul.f32 %v828, %v588
        %v837 = vmul.f32 %v832, %v574
        %v838 = vmul.f32 %v832, %v581
        %v839 = vmul.f32 %v832, %v588
        %v840 = vadd.f32 %v820, %v834
        %v841 = vadd.f32 %v821, %v835
        %v842 = vadd.f32 %v822, %v836
        %v843 = vadd.f32 %v823, %v837
        %v844 = vadd.f32 %v824, %v838
        %v845 = vadd.f32 %v825, %v839
        %846 = vset.pattern.permute.xlu0 7
        %847 = vperm.xlu0 %846, %v589
        %v848 = vpop.permute.xlu0 %847
        %850 = vset.pattern.permute.xlu0 7
        %851 = vperm.xlu0 %850, %v590
        %v852 = vpop.permute.xlu0 %851
        %v854 = vadd.f32 %v840, %v848
        %v855 = vadd.f32 %v841, %v848
        %v856 = vadd.f32 %v842, %v848
        %v857 = vadd.f32 %v843, %v852
        %v858 = vadd.f32 %v844, %v852
        %v859 = vadd.f32 %v845, %v852
        %v860 = vmax.f32 %v854, 0.0
        %v861 = vmax.f32 %v855, 0.0
        %v862 = vmax.f32 %v856, 0.0
        %v863 = vmax.f32 %v857, 0.0
        %v864 = vmax.f32 %v858, 0.0
        %v865 = vmax.f32 %v859, 0.0
        %s866 = scalar_lea.vmem %s4, 16
        %v867 = vld [vmem:[%s866] sm:$0xff]
        %v868 = vld [vmem:[%s866 + $0x8] sm:$0xff]
        %870 = vset.pattern.permute.xlu0 16
        %871 = vperm.xlu0 %870, %v867
        %v872 = vpop.permute.xlu0 %871
        %875 = vset.pattern.permute.xlu0 16
        %876 = vperm.xlu0 %875, %v868
        %v877 = vpop.permute.xlu0 %876
        %vm879 = vcmask 130048
        %v880 = vsel %vm879, %v867, 0
        %v882 = vsel %vm879, %v868, 0
        %884 = vmatprep.subr.mxu0 0.0
        %885 = vmatpush1.msra.mxu0 0.0
        %886 = vmatprep.subr.mxu0 0.0
        %887 = vmatpush1.msra.mxu0 0.0
        %888 = vmatprep.subr.mxu0 0.0
        %889 = vmatpush1.msra.mxu0 0.0
        %890 = vmatprep.subr.mxu0 0.0
        %891 = vmatpush1.msra.mxu0 0.0
        %892 = vmatprep.subr.mxu0 0.0
        %893 = vmatpush1.msra.mxu0 0.0
        %894 = vmatprep.subr.mxu0 0.0
        %895 = vmatpush1.msra.mxu0 0.0
        %896 = vmatprep.subr.mxu0 0.0
        %897 = vmatpush1.msra.mxu0 0.0
        %898 = vmatprep.subr.mxu0 0.0
        %899 = vmatpush1.msra.mxu0 0.0
        %900 = vmatprep.subr.mxu0 0.0
        %901 = vmatpush1.msra.mxu0 0.0
        %902 = vmatprep.subr.mxu0 0.0
        %903 = vmatpush1.msra.mxu0 0.0
        %904 = vmatprep.subr.mxu0 0.0
        %905 = vmatpush1.msra.mxu0 0.0
        %906 = vmatprep.subr.mxu0 0.0
        %907 = vmatpush1.msra.mxu0 0.0
        %908 = vmatprep.subr.mxu0 0.0
        %909 = vmatpush1.msra.mxu0 0.0
        %910 = vmatprep.subr.mxu0 0.0
        %911 = vmatpush1.msra.mxu0 0.0
        %912 = vmatprep.subr.mxu0 %v864
        %913 = vmatpush1.msra.mxu0 %v863
        %914 = vmatprep.subr.mxu0 %v861
        %915 = vmatpush1.msra.mxu0 %v860
        %916 = vmatprep.subr.mxu0 0.0
        %917 = vmatpush2.msra.mxu0 0.0
        %918 = vmatprep.subr.mxu0 0.0
        %919 = vmatpush2.msra.mxu0 0.0
        %920 = vmatprep.subr.mxu0 0.0
        %921 = vmatpush2.msra.mxu0 0.0
        %922 = vmatprep.subr.mxu0 0.0
        %923 = vmatpush2.msra.mxu0 0.0
        %924 = vmatprep.subr.mxu0 0.0
        %925 = vmatpush2.msra.mxu0 0.0
        %926 = vmatprep.subr.mxu0 0.0
        %927 = vmatpush2.msra.mxu0 0.0
        %928 = vmatprep.subr.mxu0 0.0
        %929 = vmatpush2.msra.mxu0 0.0
        %930 = vmatprep.subr.mxu0 0.0
        %931 = vmatpush2.msra.mxu0 0.0
        %932 = vmatprep.subr.mxu0 0.0
        %933 = vmatpush2.msra.mxu0 0.0
        %934 = vmatprep.subr.mxu0 0.0
        %935 = vmatpush2.msra.mxu0 0.0
        %936 = vmatprep.subr.mxu0 0.0
        %937 = vmatpush2.msra.mxu0 0.0
        %938 = vmatprep.subr.mxu0 0.0
        %939 = vmatpush2.msra.mxu0 0.0
        %940 = vmatprep.subr.mxu0 0.0
        %941 = vmatpush2.msra.mxu0 0.0
        %942 = vmatprep.subr.mxu0 0.0
        %943 = vmatpush2.msra.mxu0 0.0
        %944 = vmatprep.subr.mxu0 0.0
        %945 = vmatpush2.msra.mxu0 0.0
        %946 = vmatprep.subr.mxu0 0.0
        %947 = vmatpush2.msra.mxu0 0.0
        %948 = vmatprep.mubr.f32.mxu0 0.0
        %949 = vmatmul.mubr.f32.gmra.mxu0 %v880
        %v950 = vpop.f32.mrf.mxu0
        %v951 = vadd.f32 %v872, %v950
        %v952 = vpop.f32.mrf.mxu0
        %v953 = vadd.f32 %v872, %v952
        %954 = vmatprep.mubr.f32.mxu0 0.0
        %955 = vmatmul.mubr.f32.gmra.mxu0 %v882
        %v956 = vpop.f32.mrf.mxu0
        %v957 = vadd.f32 %v877, %v956
        %v958 = vpop.f32.mrf.mxu0
        %v959 = vadd.f32 %v877, %v958
        %960 = vdwg.mxu0
        %961 = vmatprep.subr.mxu0 0.0
        %962 = vmatpush1.msra.mxu0 0.0
        %963 = vmatprep.subr.mxu0 0.0
        %964 = vmatpush1.msra.mxu0 0.0
        %965 = vmatprep.subr.mxu0 0.0
        %966 = vmatpush1.msra.mxu0 0.0
        %967 = vmatprep.subr.mxu0 0.0
        %968 = vmatpush1.msra.mxu0 0.0
        %969 = vmatprep.subr.mxu0 0.0
        %970 = vmatpush1.msra.mxu0 0.0
        %971 = vmatprep.subr.mxu0 0.0
        %972 = vmatpush1.msra.mxu0 0.0
        %973 = vmatprep.subr.mxu0 0.0
        %974 = vmatpush1.msra.mxu0 0.0
        %975 = vmatprep.subr.mxu0 0.0
        %976 = vmatpush1.msra.mxu0 0.0
        %977 = vmatprep.subr.mxu0 0.0
        %978 = vmatpush1.msra.mxu0 0.0
        %979 = vmatprep.subr.mxu0 0.0
        %980 = vmatpush1.msra.mxu0 0.0
        %981 = vmatprep.subr.mxu0 0.0
        %982 = vmatpush1.msra.mxu0 0.0
        %983 = vmatprep.subr.mxu0 0.0
        %984 = vmatpush1.msra.mxu0 0.0
        %985 = vmatprep.subr.mxu0 0.0
        %986 = vmatpush1.msra.mxu0 0.0
        %987 = vmatprep.subr.mxu0 0.0
        %988 = vmatpush1.msra.mxu0 0.0
        %989 = vmatprep.subr.mxu0 0.0
        %990 = vmatpush1.msra.mxu0 %v865
        %991 = vmatprep.subr.mxu0 0.0
        %992 = vmatpush1.msra.mxu0 %v862
        %993 = vmatprep.subr.mxu0 0.0
        %994 = vmatpush2.msra.mxu0 0.0
        %995 = vmatprep.subr.mxu0 0.0
        %996 = vmatpush2.msra.mxu0 0.0
        %997 = vmatprep.subr.mxu0 0.0
        %998 = vmatpush2.msra.mxu0 0.0
        %999 = vmatprep.subr.mxu0 0.0
        %1000 = vmatpush2.msra.mxu0 0.0
        %1001 = vmatprep.subr.mxu0 0.0
        %1002 = vmatpush2.msra.mxu0 0.0
        %1003 = vmatprep.subr.mxu0 0.0
        %1004 = vmatpush2.msra.mxu0 0.0
        %1005 = vmatprep.subr.mxu0 0.0
        %1006 = vmatpush2.msra.mxu0 0.0
        %1007 = vmatprep.subr.mxu0 0.0
        %1008 = vmatpush2.msra.mxu0 0.0
        %1009 = vmatprep.subr.mxu0 0.0
        %1010 = vmatpush2.msra.mxu0 0.0
        %1011 = vmatprep.subr.mxu0 0.0
        %1012 = vmatpush2.msra.mxu0 0.0
        %1013 = vmatprep.subr.mxu0 0.0
        %1014 = vmatpush2.msra.mxu0 0.0
        %1015 = vmatprep.subr.mxu0 0.0
        %1016 = vmatpush2.msra.mxu0 0.0
        %1017 = vmatprep.subr.mxu0 0.0
        %1018 = vmatpush2.msra.mxu0 0.0
        %1019 = vmatprep.subr.mxu0 0.0
        %1020 = vmatpush2.msra.mxu0 0.0
        %1021 = vmatprep.subr.mxu0 0.0
        %1022 = vmatpush2.msra.mxu0 0.0
        %1023 = vmatprep.subr.mxu0 0.0
        %1024 = vmatpush2.msra.mxu0 0.0
        %1025 = vmatprep.mubr.f32.mxu0 0.0
        %1026 = vmatmul.mubr.f32.gmra.mxu0 %v880
        %v1027 = vpop.f32.mrf.mxu0
        %v1028 = vadd.f32 %v872, %v1027
        %v1029 = vpop.f32.mrf.mxu0
        %1030 = vmatprep.mubr.f32.mxu0 0.0
        %1031 = vmatmul.mubr.f32.gmra.mxu0 %v882
        %v1032 = vpop.f32.mrf.mxu0
        %v1033 = vadd.f32 %v877, %v1032
        %v1034 = vpop.f32.mrf.mxu0
        %1035 = vdwg.mxu0
        %v1036 = vmax.f32 %v951, 0.0
        %v1037 = vmax.f32 %v953, 0.0
        %v1038 = vmax.f32 %v1028, 0.0
        %v1039 = vmax.f32 %v957, 0.0
        %v1040 = vmax.f32 %v959, 0.0
        %v1041 = vmax.f32 %v1033, 0.0
        %s1042 = scalar_lea.vmem %s4, 32
        %v1043 = vld [vmem:[%s1042] sm:$0xff]
        %v1044 = vld [vmem:[%s1042 + $0x8] sm:$0xff]
        %1046 = vset.pattern.permute.xlu0 16
        %1047 = vperm.xlu0 %1046, %v1043
        %v1048 = vpop.permute.xlu0 %1047
        %1051 = vset.pattern.permute.xlu0 16
        %1052 = vperm.xlu0 %1051, %v1044
        %v1053 = vpop.permute.xlu0 %1052
        %v1055 = vsel %vm879, %v1043, 0
        %v1057 = vsel %vm879, %v1044, 0
        %1059 = vmatprep.subr.mxu0 0.0
        %1060 = vmatpush1.msra.mxu0 0.0
        %1061 = vmatprep.subr.mxu0 0.0
        %1062 = vmatpush1.msra.mxu0 0.0
        %1063 = vmatprep.subr.mxu0 0.0
        %1064 = vmatpush1.msra.mxu0 0.0
        %1065 = vmatprep.subr.mxu0 0.0
        %1066 = vmatpush1.msra.mxu0 0.0
        %1067 = vmatprep.subr.mxu0 0.0
        %1068 = vmatpush1.msra.mxu0 0.0
        %1069 = vmatprep.subr.mxu0 0.0
        %1070 = vmatpush1.msra.mxu0 0.0
        %1071 = vmatprep.subr.mxu0 0.0
        %1072 = vmatpush1.msra.mxu0 0.0
        %1073 = vmatprep.subr.mxu0 0.0
        %1074 = vmatpush1.msra.mxu0 0.0
        %1075 = vmatprep.subr.mxu0 0.0
        %1076 = vmatpush1.msra.mxu0 0.0
        %1077 = vmatprep.subr.mxu0 0.0
        %1078 = vmatpush1.msra.mxu0 0.0
        %1079 = vmatprep.subr.mxu0 0.0
        %1080 = vmatpush1.msra.mxu0 0.0
        %1081 = vmatprep.subr.mxu0 0.0
        %1082 = vmatpush1.msra.mxu0 0.0
        %1083 = vmatprep.subr.mxu0 0.0
        %1084 = vmatpush1.msra.mxu0 0.0
        %1085 = vmatprep.subr.mxu0 0.0
        %1086 = vmatpush1.msra.mxu0 0.0
        %1087 = vmatprep.subr.mxu0 %v1040
        %1088 = vmatpush1.msra.mxu0 %v1039
        %1089 = vmatprep.subr.mxu0 %v1037
        %1090 = vmatpush1.msra.mxu0 %v1036
        %1091 = vmatprep.subr.mxu0 0.0
        %1092 = vmatpush2.msra.mxu0 0.0
        %1093 = vmatprep.subr.mxu0 0.0
        %1094 = vmatpush2.msra.mxu0 0.0
        %1095 = vmatprep.subr.mxu0 0.0
        %1096 = vmatpush2.msra.mxu0 0.0
        %1097 = vmatprep.subr.mxu0 0.0
        %1098 = vmatpush2.msra.mxu0 0.0
        %1099 = vmatprep.subr.mxu0 0.0
        %1100 = vmatpush2.msra.mxu0 0.0
        %1101 = vmatprep.subr.mxu0 0.0
        %1102 = vmatpush2.msra.mxu0 0.0
        %1103 = vmatprep.subr.mxu0 0.0
        %1104 = vmatpush2.msra.mxu0 0.0
        %1105 = vmatprep.subr.mxu0 0.0
        %1106 = vmatpush2.msra.mxu0 0.0
        %1107 = vmatprep.subr.mxu0 0.0
        %1108 = vmatpush2.msra.mxu0 0.0
        %1109 = vmatprep.subr.mxu0 0.0
        %1110 = vmatpush2.msra.mxu0 0.0
        %1111 = vmatprep.subr.mxu0 0.0
        %1112 = vmatpush2.msra.mxu0 0.0
        %1113 = vmatprep.subr.mxu0 0.0
        %1114 = vmatpush2.msra.mxu0 0.0
        %1115 = vmatprep.subr.mxu0 0.0
        %1116 = vmatpush2.msra.mxu0 0.0
        %1117 = vmatprep.subr.mxu0 0.0
        %1118 = vmatpush2.msra.mxu0 0.0
        %1119 = vmatprep.subr.mxu0 0.0
        %1120 = vmatpush2.msra.mxu0 0.0
        %1121 = vmatprep.subr.mxu0 0.0
        %1122 = vmatpush2.msra.mxu0 0.0
        %1123 = vmatprep.mubr.f32.mxu0 0.0
        %1124 = vmatmul.mubr.f32.gmra.mxu0 %v1055
        %v1125 = vpop.f32.mrf.mxu0
        %v1126 = vadd.f32 %v1048, %v1125
        %v1127 = vpop.f32.mrf.mxu0
        %v1128 = vadd.f32 %v1048, %v1127
        %1129 = vmatprep.mubr.f32.mxu0 0.0
        %1130 = vmatmul.mubr.f32.gmra.mxu0 %v1057
        %v1131 = vpop.f32.mrf.mxu0
        %v1132 = vadd.f32 %v1053, %v1131
        %v1133 = vpop.f32.mrf.mxu0
        %v1134 = vadd.f32 %v1053, %v1133
        %1135 = vdwg.mxu0
        %1136 = vmatprep.subr.mxu0 0.0
        %1137 = vmatpush1.msra.mxu0 0.0
        %1138 = vmatprep.subr.mxu0 0.0
        %1139 = vmatpush1.msra.mxu0 0.0
        %1140 = vmatprep.subr.mxu0 0.0
        %1141 = vmatpush1.msra.mxu0 0.0
        %1142 = vmatprep.subr.mxu0 0.0
        %1143 = vmatpush1.msra.mxu0 0.0
        %1144 = vmatprep.subr.mxu0 0.0
        %1145 = vmatpush1.msra.mxu0 0.0
        %1146 = vmatprep.subr.mxu0 0.0
        %1147 = vmatpush1.msra.mxu0 0.0
        %1148 = vmatprep.subr.mxu0 0.0
        %1149 = vmatpush1.msra.mxu0 0.0
        %1150 = vmatprep.subr.mxu0 0.0
        %1151 = vmatpush1.msra.mxu0 0.0
        %1152 = vmatprep.subr.mxu0 0.0
        %1153 = vmatpush1.msra.mxu0 0.0
        %1154 = vmatprep.subr.mxu0 0.0
        %1155 = vmatpush1.msra.mxu0 0.0
        %1156 = vmatprep.subr.mxu0 0.0
        %1157 = vmatpush1.msra.mxu0 0.0
        %1158 = vmatprep.subr.mxu0 0.0
        %1159 = vmatpush1.msra.mxu0 0.0
        %1160 = vmatprep.subr.mxu0 0.0
        %1161 = vmatpush1.msra.mxu0 0.0
        %1162 = vmatprep.subr.mxu0 0.0
        %1163 = vmatpush1.msra.mxu0 0.0
        %1164 = vmatprep.subr.mxu0 0.0
        %1165 = vmatpush1.msra.mxu0 %v1041
        %1166 = vmatprep.subr.mxu0 0.0
        %1167 = vmatpush1.msra.mxu0 %v1038
        %1168 = vmatprep.subr.mxu0 0.0
        %1169 = vmatpush2.msra.mxu0 0.0
        %1170 = vmatprep.subr.mxu0 0.0
        %1171 = vmatpush2.msra.mxu0 0.0
        %1172 = vmatprep.subr.mxu0 0.0
        %1173 = vmatpush2.msra.mxu0 0.0
        %1174 = vmatprep.subr.mxu0 0.0
        %1175 = vmatpush2.msra.mxu0 0.0
        %1176 = vmatprep.subr.mxu0 0.0
        %1177 = vmatpush2.msra.mxu0 0.0
        %1178 = vmatprep.subr.mxu0 0.0
        %1179 = vmatpush2.msra.mxu0 0.0
        %1180 = vmatprep.subr.mxu0 0.0
        %1181 = vmatpush2.msra.mxu0 0.0
        %1182 = vmatprep.subr.mxu0 0.0
        %1183 = vmatpush2.msra.mxu0 0.0
        %1184 = vmatprep.subr.mxu0 0.0
        %1185 = vmatpush2.msra.mxu0 0.0
        %1186 = vmatprep.subr.mxu0 0.0
        %1187 = vmatpush2.msra.mxu0 0.0
        %1188 = vmatprep.subr.mxu0 0.0
        %1189 = vmatpush2.msra.mxu0 0.0
        %1190 = vmatprep.subr.mxu0 0.0
        %1191 = vmatpush2.msra.mxu0 0.0
        %1192 = vmatprep.subr.mxu0 0.0
        %1193 = vmatpush2.msra.mxu0 0.0
        %1194 = vmatprep.subr.mxu0 0.0
        %1195 = vmatpush2.msra.mxu0 0.0
        %1196 = vmatprep.subr.mxu0 0.0
        %1197 = vmatpush2.msra.mxu0 0.0
        %1198 = vmatprep.subr.mxu0 0.0
        %1199 = vmatpush2.msra.mxu0 0.0
        %1200 = vmatprep.mubr.f32.mxu0 0.0
        %1201 = vmatmul.mubr.f32.gmra.mxu0 %v1055
        %v1202 = vpop.f32.mrf.mxu0
        %v1203 = vadd.f32 %v1048, %v1202
        %v1204 = vpop.f32.mrf.mxu0
        %1205 = vmatprep.mubr.f32.mxu0 0.0
        %1206 = vmatmul.mubr.f32.gmra.mxu0 %v1057
        %v1207 = vpop.f32.mrf.mxu0
        %v1208 = vadd.f32 %v1053, %v1207
        %v1209 = vpop.f32.mrf.mxu0
        %1210 = vdwg.mxu0
        %v1211 = vmax.f32 %v1126, 0.0
        %v1212 = vmax.f32 %v1128, 0.0
        %v1213 = vmax.f32 %v1203, 0.0
        %v1214 = vmax.f32 %v1132, 0.0
        %v1215 = vmax.f32 %v1134, 0.0
        %v1216 = vmax.f32 %v1208, 0.0
        %s1217 = scalar_lea.vmem %s4, 48
        %v1218 = vld [vmem:[%s1217] sm:$0xff]
        %1220 = vset.pattern.permute.xlu0 16
        %1221 = vperm.xlu0 %1220, %v1218
        %v1222 = vpop.permute.xlu0 %1221
        %v1224 = vsel %vm879, %v1218, 0
        %1226 = vmatprep.subr.mxu0 0.0
        %1227 = vmatpush1.msra.mxu0 0.0
        %1228 = vmatprep.subr.mxu0 0.0
        %1229 = vmatpush1.msra.mxu0 0.0
        %1230 = vmatprep.subr.mxu0 0.0
        %1231 = vmatpush1.msra.mxu0 0.0
        %1232 = vmatprep.subr.mxu0 0.0
        %1233 = vmatpush1.msra.mxu0 0.0
        %1234 = vmatprep.subr.mxu0 0.0
        %1235 = vmatpush1.msra.mxu0 0.0
        %1236 = vmatprep.subr.mxu0 0.0
        %1237 = vmatpush1.msra.mxu0 0.0
        %1238 = vmatprep.subr.mxu0 0.0
        %1239 = vmatpush1.msra.mxu0 0.0
        %1240 = vmatprep.subr.mxu0 0.0
        %1241 = vmatpush1.msra.mxu0 0.0
        %1242 = vmatprep.subr.mxu0 0.0
        %1243 = vmatpush1.msra.mxu0 0.0
        %1244 = vmatprep.subr.mxu0 0.0
        %1245 = vmatpush1.msra.mxu0 0.0
        %1246 = vmatprep.subr.mxu0 0.0
        %1247 = vmatpush1.msra.mxu0 0.0
        %1248 = vmatprep.subr.mxu0 0.0
        %1249 = vmatpush1.msra.mxu0 0.0
        %1250 = vmatprep.subr.mxu0 0.0
        %1251 = vmatpush1.msra.mxu0 0.0
        %1252 = vmatprep.subr.mxu0 0.0
        %1253 = vmatpush1.msra.mxu0 0.0
        %1254 = vmatprep.subr.mxu0 %v1215
        %1255 = vmatpush1.msra.mxu0 %v1214
        %1256 = vmatprep.subr.mxu0 %v1212
        %1257 = vmatpush1.msra.mxu0 %v1211
        %1258 = vmatprep.subr.mxu0 0.0
        %1259 = vmatpush2.msra.mxu0 0.0
        %1260 = vmatprep.subr.mxu0 0.0
        %1261 = vmatpush2.msra.mxu0 0.0
        %1262 = vmatprep.subr.mxu0 0.0
        %1263 = vmatpush2.msra.mxu0 0.0
        %1264 = vmatprep.subr.mxu0 0.0
        %1265 = vmatpush2.msra.mxu0 0.0
        %1266 = vmatprep.subr.mxu0 0.0
        %1267 = vmatpush2.msra.mxu0 0.0
        %1268 = vmatprep.subr.mxu0 0.0
        %1269 = vmatpush2.msra.mxu0 0.0
        %1270 = vmatprep.subr.mxu0 0.0
        %1271 = vmatpush2.msra.mxu0 0.0
        %1272 = vmatprep.subr.mxu0 0.0
        %1273 = vmatpush2.msra.mxu0 0.0
        %1274 = vmatprep.subr.mxu0 0.0
        %1275 = vmatpush2.msra.mxu0 0.0
        %1276 = vmatprep.subr.mxu0 0.0
        %1277 = vmatpush2.msra.mxu0 0.0
        %1278 = vmatprep.subr.mxu0 0.0
        %1279 = vmatpush2.msra.mxu0 0.0
        %1280 = vmatprep.subr.mxu0 0.0
        %1281 = vmatpush2.msra.mxu0 0.0
        %1282 = vmatprep.subr.mxu0 0.0
        %1283 = vmatpush2.msra.mxu0 0.0
        %1284 = vmatprep.subr.mxu0 0.0
        %1285 = vmatpush2.msra.mxu0 0.0
        %1286 = vmatprep.subr.mxu0 0.0
        %1287 = vmatpush2.msra.mxu0 0.0
        %1288 = vmatprep.subr.mxu0 0.0
        %1289 = vmatpush2.msra.mxu0 0.0
        %1290 = vmatprep.mubr.f32.mxu0 0.0
        %1291 = vmatmul.mubr.f32.gmra.mxu0 %v1224
        %v1292 = vpop.f32.mrf.mxu0
        %v1293 = vadd.f32 %v1222, %v1292
        %v1294 = vpop.f32.mrf.mxu0
        %v1295 = vadd.f32 %v1222, %v1294
        %1296 = vdwg.mxu0
        %1297 = vmatprep.subr.mxu0 0.0
        %1298 = vmatpush1.msra.mxu0 0.0
        %1299 = vmatprep.subr.mxu0 0.0
        %1300 = vmatpush1.msra.mxu0 0.0
        %1301 = vmatprep.subr.mxu0 0.0
        %1302 = vmatpush1.msra.mxu0 0.0
        %1303 = vmatprep.subr.mxu0 0.0
        %1304 = vmatpush1.msra.mxu0 0.0
        %1305 = vmatprep.subr.mxu0 0.0
        %1306 = vmatpush1.msra.mxu0 0.0
        %1307 = vmatprep.subr.mxu0 0.0
        %1308 = vmatpush1.msra.mxu0 0.0
        %1309 = vmatprep.subr.mxu0 0.0
        %1310 = vmatpush1.msra.mxu0 0.0
        %1311 = vmatprep.subr.mxu0 0.0
        %1312 = vmatpush1.msra.mxu0 0.0
        %1313 = vmatprep.subr.mxu0 0.0
        %1314 = vmatpush1.msra.mxu0 0.0
        %1315 = vmatprep.subr.mxu0 0.0
        %1316 = vmatpush1.msra.mxu0 0.0
        %1317 = vmatprep.subr.mxu0 0.0
        %1318 = vmatpush1.msra.mxu0 0.0
        %1319 = vmatprep.subr.mxu0 0.0
        %1320 = vmatpush1.msra.mxu0 0.0
        %1321 = vmatprep.subr.mxu0 0.0
        %1322 = vmatpush1.msra.mxu0 0.0
        %1323 = vmatprep.subr.mxu0 0.0
        %1324 = vmatpush1.msra.mxu0 0.0
        %1325 = vmatprep.subr.mxu0 0.0
        %1326 = vmatpush1.msra.mxu0 %v1216
        %1327 = vmatprep.subr.mxu0 0.0
        %1328 = vmatpush1.msra.mxu0 %v1213
        %1329 = vmatprep.subr.mxu0 0.0
        %1330 = vmatpush2.msra.mxu0 0.0
        %1331 = vmatprep.subr.mxu0 0.0
        %1332 = vmatpush2.msra.mxu0 0.0
        %1333 = vmatprep.subr.mxu0 0.0
        %1334 = vmatpush2.msra.mxu0 0.0
        %1335 = vmatprep.subr.mxu0 0.0
        %1336 = vmatpush2.msra.mxu0 0.0
        %1337 = vmatprep.subr.mxu0 0.0
        %1338 = vmatpush2.msra.mxu0 0.0
        %1339 = vmatprep.subr.mxu0 0.0
        %1340 = vmatpush2.msra.mxu0 0.0
        %1341 = vmatprep.subr.mxu0 0.0
        %1342 = vmatpush2.msra.mxu0 0.0
        %1343 = vmatprep.subr.mxu0 0.0
        %1344 = vmatpush2.msra.mxu0 0.0
        %1345 = vmatprep.subr.mxu0 0.0
        %1346 = vmatpush2.msra.mxu0 0.0
        %1347 = vmatprep.subr.mxu0 0.0
        %1348 = vmatpush2.msra.mxu0 0.0
        %1349 = vmatprep.subr.mxu0 0.0
        %1350 = vmatpush2.msra.mxu0 0.0
        %1351 = vmatprep.subr.mxu0 0.0
        %1352 = vmatpush2.msra.mxu0 0.0
        %1353 = vmatprep.subr.mxu0 0.0
        %1354 = vmatpush2.msra.mxu0 0.0
        %1355 = vmatprep.subr.mxu0 0.0
        %1356 = vmatpush2.msra.mxu0 0.0
        %1357 = vmatprep.subr.mxu0 0.0
        %1358 = vmatpush2.msra.mxu0 0.0
        %1359 = vmatprep.subr.mxu0 0.0
        %1360 = vmatpush2.msra.mxu0 0.0
        %1361 = vmatprep.mubr.f32.mxu0 0.0
        %1362 = vmatmul.mubr.f32.gmra.mxu0 %v1224
        %v1363 = vpop.f32.mrf.mxu0
        %v1364 = vadd.f32 %v1222, %v1363
        %v1365 = vpop.f32.mrf.mxu0
        %1366 = vdwg.mxu0
        %vm1367 = vcmask 1043456
        %v1368 = vsel %vm1367, %v1293, -inf
        %v1369 = vrot.slane %v1368, 4
        %v1370 = vmax.f32 %v1368, %v1369
        %v1371 = vrot.slane %v1370, 2
        %v1372 = vmax.f32 %v1370, %v1371
        %v1373 = vrot.slane %v1372, 1
        %v1374 = vmax.f32 %v1372, %v1373
        %v1375 = vsel %vm1367, %v1295, -inf
        %v1376 = vrot.slane %v1375, 4
        %v1377 = vmax.f32 %v1375, %v1376
        %v1378 = vrot.slane %v1377, 2
        %v1379 = vmax.f32 %v1377, %v1378
        %v1380 = vrot.slane %v1379, 1
        %v1381 = vmax.f32 %v1379, %v1380
        %v1382 = vsel %vm1367, %v1364, -inf
        %v1383 = vrot.slane %v1382, 4
        %v1384 = vmax.f32 %v1382, %v1383
        %v1385 = vrot.slane %v1384, 2
        %v1386 = vmax.f32 %v1384, %v1385
        %v1387 = vrot.slane %v1386, 1
        %v1388 = vmax.f32 %v1386, %v1387
        %v1389 = vsub.f32 %v1293, %v1374
        %v1390 = vsub.f32 %v1295, %v1381
        %v1391 = vsub.f32 %v1364, %v1388
        %v1392 = vmul.f32 %v1389, 1.442695
        %v1393 = vpow.pop %v1392
        %v1394 = vmul.f32 %v1390, 1.442695
        %v1395 = vpow.pop %v1394
        %v1396 = vmul.f32 %v1391, 1.442695
        %v1397 = vpow.pop %v1396
        %v1398 = vsel %vm1367, %v1393, 0.0
        %v1399 = vrot.slane %v1398, 4
        %v1400 = vadd.f32 %v1398, %v1399
        %v1401 = vrot.slane %v1400, 2
        %v1402 = vadd.f32 %v1400, %v1401
        %v1403 = vrot.slane %v1402, 1
        %v1404 = vadd.f32 %v1402, %v1403
        %v1405 = vsel %vm1367, %v1395, 0.0
        %v1406 = vrot.slane %v1405, 4
        %v1407 = vadd.f32 %v1405, %v1406
        %v1408 = vrot.slane %v1407, 2
        %v1409 = vadd.f32 %v1407, %v1408
        %v1410 = vrot.slane %v1409, 1
        %v1411 = vadd.f32 %v1409, %v1410
        %v1412 = vsel %vm1367, %v1397, 0.0
        %v1413 = vrot.slane %v1412, 4
        %v1414 = vadd.f32 %v1412, %v1413
        %v1415 = vrot.slane %v1414, 2
        %v1416 = vadd.f32 %v1414, %v1415
        %v1417 = vrot.slane %v1416, 1
        %v1418 = vadd.f32 %v1416, %v1417
        %v1419 = vrcp.pop %v1404
        %v1420 = vrcp.pop %v1411
        %v1421 = vrcp.pop %v1418
        %v1422 = vmul.f32 %v1393, %v1419
        %v1423 = vmul.f32 %v1395, %v1420
        %v1424 = vmul.f32 %v1397, %v1421
        %v1425 = vunpack.c.l.bf16 %v379
        %v1426 = vunpack.c.l.bf16 %v380
        %v1427 = vunpack.c.l.bf16 %v381
        %v1428 = vsub.f32 %v1425, %v486
        %v1429 = vsub.f32 %v1426, %v488
        %v1430 = vsub.f32 %v1427, %v529
        %v1431 = vpack.c.bf16 %v1428, %v1428
        %v1432 = vpack.c.bf16 %v1429, %v1429
        %v1433 = vpack.c.bf16 %v1430, %v1430
        %v1434 = vld [vmem:[%s5] sm:$0xf]
        %v1435 = vld [vmem:[%s5 + $0x4] sm:$0xf]
        %v1436 = vld [vmem:[%s5 + $0x8] sm:$0xf]
        %v1437 = vld [vmem:[%s5 + $0xc] sm:$0xf]
        %v1438 = vld [vmem:[%s5 + $0x10] sm:$0xf]
        %v1439 = vld [vmem:[%s5 + $0x14] sm:$0xf]
        %v1440 = vld [vmem:[%s5 + $0x18] sm:$0xf]
        %v1441 = vld [vmem:[%s5 + $0x1c] sm:$0xf]
        %s1442 = scalar_lea.vmem %s5, 32
        %v1443 = vld [vmem:[%s1442] sm:$0xf]
        %v1444 = vld [vmem:[%s1442 + $0x4] sm:$0xf]
        %v1445 = vld [vmem:[%s1442 + $0x8] sm:$0xf]
        %v1446 = vld [vmem:[%s1442 + $0xc] sm:$0xf]
        %v1447 = vld [vmem:[%s1442 + $0x10] sm:$0xf]
        %v1448 = vld [vmem:[%s1442 + $0x14] sm:$0xf]
        %v1449 = vld [vmem:[%s1442 + $0x18] sm:$0xf]
        %v1450 = vld [vmem:[%s1442 + $0x1c] sm:$0xf]
        %v1459 = vunpack.c.l.b16 %v1443
        %v1460 = vunpack.c.l.b16 %v1444
        %v1461 = vunpack.c.l.b16 %v1445
        %v1462 = vunpack.c.l.b16 %v1446
        %v1463 = vunpack.c.l.b16 %v1447
        %v1464 = vunpack.c.l.b16 %v1448
        %v1465 = vunpack.c.l.b16 %v1449
        %v1466 = vunpack.c.l.b16 %v1450
        %v1467 = vpack.c.b16 %v1460, %v1459
        %v1468 = vpack.c.b16 %v1462, %v1461
        %v1469 = vpack.c.b16 %v1464, %v1463
        %v1470 = vpack.c.b16 %v1466, %v1465
        %vm1471 = vcmask 64512
        %v1473 = vsel %vm1471, %v1467, 0
        %v1476 = vsel %vm1471, %v1468, 0
        %v1479 = vsel %vm1471, %v1469, 0
        %v1482 = vsel %vm1471, %v1470, 0
        %v1485 = vsel %vm1367, %v379, 0
        %v1488 = vsel %vm1367, %v380, 0
        %v1491 = vsel %vm1367, %v381, 0
        %1493 = vmatprep.subr.bf16.mxu0 0
        %1494 = vmatpush1.bf16.msra.mxu0 0
        %1495 = vmatprep.subr.bf16.mxu0 0
        %1496 = vmatpush1.bf16.msra.mxu0 0
        %1497 = vmatprep.subr.bf16.mxu0 0
        %1498 = vmatpush1.bf16.msra.mxu0 0
        %1499 = vmatprep.subr.bf16.mxu0 0
        %1500 = vmatpush1.bf16.msra.mxu0 0
        %1501 = vmatprep.subr.bf16.mxu0 0
        %1502 = vmatpush1.bf16.msra.mxu0 0
        %1503 = vmatprep.subr.bf16.mxu0 0
        %1504 = vmatpush1.bf16.msra.mxu0 0
        %1505 = vmatprep.subr.bf16.mxu0 0
        %1506 = vmatpush1.bf16.msra.mxu0 0
        %1507 = vmatprep.subr.bf16.mxu0 %v1488
        %1508 = vmatpush1.bf16.msra.mxu0 %v1485
        %1509 = vmatprep.subr.bf16.mxu0 0
        %1510 = vmatpush2.bf16.msra.mxu0 0
        %1511 = vmatprep.subr.bf16.mxu0 0
        %1512 = vmatpush2.bf16.msra.mxu0 0
        %1513 = vmatprep.subr.bf16.mxu0 0
        %1514 = vmatpush2.bf16.msra.mxu0 0
        %1515 = vmatprep.subr.bf16.mxu0 0
        %1516 = vmatpush2.bf16.msra.mxu0 0
        %1517 = vmatprep.subr.bf16.mxu0 0
        %1518 = vmatpush2.bf16.msra.mxu0 0
        %1519 = vmatprep.subr.bf16.mxu0 0
        %1520 = vmatpush2.bf16.msra.mxu0 0
        %1521 = vmatprep.subr.bf16.mxu0 0
        %1522 = vmatpush2.bf16.msra.mxu0 0
        %1523 = vmatprep.subr.bf16.mxu0 0
        %1524 = vmatpush2.bf16.msra.mxu0 0
        %1525 = vmatprep.mubr.bf16.mxu0 0
        %1526 = vmatmul.mubr.bf16.gmra.mxu0 %v1473
        %v1527 = vpop.f32.mrf.mxu0
        %v1528 = vadd.f32 0.0, %v1527
        %v1529 = vpop.f32.mrf.mxu0
        %v1530 = vadd.f32 0.0, %v1529
        %v1531 = vpop.f32.mrf.mxu0
        %v1532 = vadd.f32 0.0, %v1531
        %v1533 = vpop.f32.mrf.mxu0
        %v1534 = vadd.f32 0.0, %v1533
        %1535 = vmatprep.mubr.bf16.mxu0 0
        %1536 = vmatmul.mubr.bf16.gmra.mxu0 %v1476
        %v1537 = vpop.f32.mrf.mxu0
        %v1538 = vadd.f32 0.0, %v1537
        %v1539 = vpop.f32.mrf.mxu0
        %v1540 = vadd.f32 0.0, %v1539
        %v1541 = vpop.f32.mrf.mxu0
        %v1542 = vadd.f32 0.0, %v1541
        %v1543 = vpop.f32.mrf.mxu0
        %v1544 = vadd.f32 0.0, %v1543
        %1545 = vmatprep.mubr.bf16.mxu0 0
        %1546 = vmatmul.mubr.bf16.gmra.mxu0 %v1479
        %v1547 = vpop.f32.mrf.mxu0
        %v1548 = vadd.f32 0.0, %v1547
        %v1549 = vpop.f32.mrf.mxu0
        %v1550 = vadd.f32 0.0, %v1549
        %v1551 = vpop.f32.mrf.mxu0
        %v1552 = vadd.f32 0.0, %v1551
        %v1553 = vpop.f32.mrf.mxu0
        %v1554 = vadd.f32 0.0, %v1553
        %1555 = vmatprep.mubr.bf16.mxu0 0
        %1556 = vmatmul.mubr.bf16.gmra.mxu0 %v1482
        %v1557 = vpop.f32.mrf.mxu0
        %v1558 = vadd.f32 0.0, %v1557
        %v1559 = vpop.f32.mrf.mxu0
        %v1560 = vadd.f32 0.0, %v1559
        %v1561 = vpop.f32.mrf.mxu0
        %v1562 = vadd.f32 0.0, %v1561
        %v1563 = vpop.f32.mrf.mxu0
        %v1564 = vadd.f32 0.0, %v1563
        %1565 = vdwg.mxu0
        %1566 = vmatprep.subr.bf16.mxu0 0
        %1567 = vmatpush1.bf16.msra.mxu0 0
        %1568 = vmatprep.subr.bf16.mxu0 0
        %1569 = vmatpush1.bf16.msra.mxu0 0
        %1570 = vmatprep.subr.bf16.mxu0 0
        %1571 = vmatpush1.bf16.msra.mxu0 0
        %1572 = vmatprep.subr.bf16.mxu0 0
        %1573 = vmatpush1.bf16.msra.mxu0 0
        %1574 = vmatprep.subr.bf16.mxu0 0
        %1575 = vmatpush1.bf16.msra.mxu0 0
        %1576 = vmatprep.subr.bf16.mxu0 0
        %1577 = vmatpush1.bf16.msra.mxu0 0
        %1578 = vmatprep.subr.bf16.mxu0 0
        %1579 = vmatpush1.bf16.msra.mxu0 0
        %1580 = vmatprep.subr.bf16.mxu0 0
        %1581 = vmatpush1.bf16.msra.mxu0 %v1491
        %1582 = vmatprep.subr.bf16.mxu0 0
        %1583 = vmatpush2.bf16.msra.mxu0 0
        %1584 = vmatprep.subr.bf16.mxu0 0
        %1585 = vmatpush2.bf16.msra.mxu0 0
        %1586 = vmatprep.subr.bf16.mxu0 0
        %1587 = vmatpush2.bf16.msra.mxu0 0
        %1588 = vmatprep.subr.bf16.mxu0 0
        %1589 = vmatpush2.bf16.msra.mxu0 0
        %1590 = vmatprep.subr.bf16.mxu0 0
        %1591 = vmatpush2.bf16.msra.mxu0 0
        %1592 = vmatprep.subr.bf16.mxu0 0
        %1593 = vmatpush2.bf16.msra.mxu0 0
        %1594 = vmatprep.subr.bf16.mxu0 0
        %1595 = vmatpush2.bf16.msra.mxu0 0
        %1596 = vmatprep.subr.bf16.mxu0 0
        %1597 = vmatpush2.bf16.msra.mxu0 0
        %1598 = vmatprep.mubr.bf16.mxu0 0
        %1599 = vmatmul.mubr.bf16.gmra.mxu0 %v1473
        %v1600 = vpop.f32.mrf.mxu0
        %v1601 = vadd.f32 0.0, %v1600
        %v1602 = vpop.f32.mrf.mxu0
        %v1603 = vpop.f32.mrf.mxu0
        %v1604 = vadd.f32 0.0, %v1603
        %v1605 = vpop.f32.mrf.mxu0
        %1606 = vmatprep.mubr.bf16.mxu0 0
        %1607 = vmatmul.mubr.bf16.gmra.mxu0 %v1476
        %v1608 = vpop.f32.mrf.mxu0
        %v1609 = vadd.f32 0.0, %v1608
        %v1610 = vpop.f32.mrf.mxu0
        %v1611 = vpop.f32.mrf.mxu0
        %v1612 = vadd.f32 0.0, %v1611
        %v1613 = vpop.f32.mrf.mxu0
        %1614 = vmatprep.mubr.bf16.mxu0 0
        %1615 = vmatmul.mubr.bf16.gmra.mxu0 %v1479
        %v1616 = vpop.f32.mrf.mxu0
        %v1617 = vadd.f32 0.0, %v1616
        %v1618 = vpop.f32.mrf.mxu0
        %v1619 = vpop.f32.mrf.mxu0
        %v1620 = vadd.f32 0.0, %v1619
        %v1621 = vpop.f32.mrf.mxu0
        %1622 = vmatprep.mubr.bf16.mxu0 0
        %1623 = vmatmul.mubr.bf16.gmra.mxu0 %v1482
        %v1624 = vpop.f32.mrf.mxu0
        %v1625 = vadd.f32 0.0, %v1624
        %v1626 = vpop.f32.mrf.mxu0
        %v1627 = vpop.f32.mrf.mxu0
        %v1628 = vadd.f32 0.0, %v1627
        %v1629 = vpop.f32.mrf.mxu0
        %1630 = vdwg.mxu0
        %v1639 = vunpack.c.l.b16 %v1434
        %v1640 = vunpack.c.l.b16 %v1435
        %v1641 = vunpack.c.l.b16 %v1436
        %v1642 = vunpack.c.l.b16 %v1437
        %v1643 = vunpack.c.l.b16 %v1438
        %v1644 = vunpack.c.l.b16 %v1439
        %v1645 = vunpack.c.l.b16 %v1440
        %v1646 = vunpack.c.l.b16 %v1441
        %v1647 = vpack.c.b16 %v1640, %v1639
        %v1648 = vpack.c.b16 %v1642, %v1641
        %v1649 = vpack.c.b16 %v1644, %v1643
        %v1650 = vpack.c.b16 %v1646, %v1645
        %v1652 = vsel %vm1471, %v1647, 0
        %v1655 = vsel %vm1471, %v1648, 0
        %v1658 = vsel %vm1471, %v1649, 0
        %v1661 = vsel %vm1471, %v1650, 0
        %v1664 = vsel %vm1367, %v1431, 0
        %v1667 = vsel %vm1367, %v1432, 0
        %v1670 = vsel %vm1367, %v1433, 0
        %1672 = vmatprep.subr.bf16.mxu0 0
        %1673 = vmatpush1.bf16.msra.mxu0 0
        %1674 = vmatprep.subr.bf16.mxu0 0
        %1675 = vmatpush1.bf16.msra.mxu0 0
        %1676 = vmatprep.subr.bf16.mxu0 0
        %1677 = vmatpush1.bf16.msra.mxu0 0
        %1678 = vmatprep.subr.bf16.mxu0 0
        %1679 = vmatpush1.bf16.msra.mxu0 0
        %1680 = vmatprep.subr.bf16.mxu0 0
        %1681 = vmatpush1.bf16.msra.mxu0 0
        %1682 = vmatprep.subr.bf16.mxu0 0
        %1683 = vmatpush1.bf16.msra.mxu0 0
        %1684 = vmatprep.subr.bf16.mxu0 0
        %1685 = vmatpush1.bf16.msra.mxu0 0
        %1686 = vmatprep.subr.bf16.mxu0 %v1667
        %1687 = vmatpush1.bf16.msra.mxu0 %v1664
        %1688 = vmatprep.subr.bf16.mxu0 0
        %1689 = vmatpush2.bf16.msra.mxu0 0
        %1690 = vmatprep.subr.bf16.mxu0 0
        %1691 = vmatpush2.bf16.msra.mxu0 0
        %1692 = vmatprep.subr.bf16.mxu0 0
        %1693 = vmatpush2.bf16.msra.mxu0 0
        %1694 = vmatprep.subr.bf16.mxu0 0
        %1695 = vmatpush2.bf16.msra.mxu0 0
        %1696 = vmatprep.subr.bf16.mxu0 0
        %1697 = vmatpush2.bf16.msra.mxu0 0
        %1698 = vmatprep.subr.bf16.mxu0 0
        %1699 = vmatpush2.bf16.msra.mxu0 0
        %1700 = vmatprep.subr.bf16.mxu0 0
        %1701 = vmatpush2.bf16.msra.mxu0 0
        %1702 = vmatprep.subr.bf16.mxu0 0
        %1703 = vmatpush2.bf16.msra.mxu0 0
        %1704 = vmatprep.mubr.bf16.mxu0 0
        %1705 = vmatmul.mubr.bf16.gmra.mxu0 %v1652
        %v1706 = vpop.f32.mrf.mxu0
        %v1707 = vadd.f32 %v1528, %v1706
        %v1708 = vpop.f32.mrf.mxu0
        %v1709 = vadd.f32 %v1530, %v1708
        %v1710 = vpop.f32.mrf.mxu0
        %v1711 = vadd.f32 %v1532, %v1710
        %v1712 = vpop.f32.mrf.mxu0
        %v1713 = vadd.f32 %v1534, %v1712
        %1714 = vmatprep.mubr.bf16.mxu0 0
        %1715 = vmatmul.mubr.bf16.gmra.mxu0 %v1655
        %v1716 = vpop.f32.mrf.mxu0
        %v1717 = vadd.f32 %v1538, %v1716
        %v1718 = vpop.f32.mrf.mxu0
        %v1719 = vadd.f32 %v1540, %v1718
        %v1720 = vpop.f32.mrf.mxu0
        %v1721 = vadd.f32 %v1542, %v1720
        %v1722 = vpop.f32.mrf.mxu0
        %v1723 = vadd.f32 %v1544, %v1722
        %1724 = vmatprep.mubr.bf16.mxu0 0
        %1725 = vmatmul.mubr.bf16.gmra.mxu0 %v1658
        %v1726 = vpop.f32.mrf.mxu0
        %v1727 = vadd.f32 %v1548, %v1726
        %v1728 = vpop.f32.mrf.mxu0
        %v1729 = vadd.f32 %v1550, %v1728
        %v1730 = vpop.f32.mrf.mxu0
        %v1731 = vadd.f32 %v1552, %v1730
        %v1732 = vpop.f32.mrf.mxu0
        %v1733 = vadd.f32 %v1554, %v1732
        %1734 = vmatprep.mubr.bf16.mxu0 0
        %1735 = vmatmul.mubr.bf16.gmra.mxu0 %v1661
        %v1736 = vpop.f32.mrf.mxu0
        %v1737 = vadd.f32 %v1558, %v1736
        %v1738 = vpop.f32.mrf.mxu0
        %v1739 = vadd.f32 %v1560, %v1738
        %v1740 = vpop.f32.mrf.mxu0
        %v1741 = vadd.f32 %v1562, %v1740
        %v1742 = vpop.f32.mrf.mxu0
        %v1743 = vadd.f32 %v1564, %v1742
        %1744 = vdwg.mxu0
        %1745 = vmatprep.subr.bf16.mxu0 0
        %1746 = vmatpush1.bf16.msra.mxu0 0
        %1747 = vmatprep.subr.bf16.mxu0 0
        %1748 = vmatpush1.bf16.msra.mxu0 0
        %1749 = vmatprep.subr.bf16.mxu0 0
        %1750 = vmatpush1.bf16.msra.mxu0 0
        %1751 = vmatprep.subr.bf16.mxu0 0
        %1752 = vmatpush1.bf16.msra.mxu0 0
        %1753 = vmatprep.subr.bf16.mxu0 0
        %1754 = vmatpush1.bf16.msra.mxu0 0
        %1755 = vmatprep.subr.bf16.mxu0 0
        %1756 = vmatpush1.bf16.msra.mxu0 0
        %1757 = vmatprep.subr.bf16.mxu0 0
        %1758 = vmatpush1.bf16.msra.mxu0 0
        %1759 = vmatprep.subr.bf16.mxu0 0
        %1760 = vmatpush1.bf16.msra.mxu0 %v1670
        %1761 = vmatprep.subr.bf16.mxu0 0
        %1762 = vmatpush2.bf16.msra.mxu0 0
        %1763 = vmatprep.subr.bf16.mxu0 0
        %1764 = vmatpush2.bf16.msra.mxu0 0
        %1765 = vmatprep.subr.bf16.mxu0 0
        %1766 = vmatpush2.bf16.msra.mxu0 0
        %1767 = vmatprep.subr.bf16.mxu0 0
        %1768 = vmatpush2.bf16.msra.mxu0 0
        %1769 = vmatprep.subr.bf16.mxu0 0
        %1770 = vmatpush2.bf16.msra.mxu0 0
        %1771 = vmatprep.subr.bf16.mxu0 0
        %1772 = vmatpush2.bf16.msra.mxu0 0
        %1773 = vmatprep.subr.bf16.mxu0 0
        %1774 = vmatpush2.bf16.msra.mxu0 0
        %1775 = vmatprep.subr.bf16.mxu0 0
        %1776 = vmatpush2.bf16.msra.mxu0 0
        %1777 = vmatprep.mubr.bf16.mxu0 0
        %1778 = vmatmul.mubr.bf16.gmra.mxu0 %v1652
        %v1779 = vpop.f32.mrf.mxu0
        %v1780 = vadd.f32 %v1601, %v1779
        %v1781 = vpop.f32.mrf.mxu0
        %v1782 = vpop.f32.mrf.mxu0
        %v1783 = vadd.f32 %v1604, %v1782
        %v1784 = vpop.f32.mrf.mxu0
        %1785 = vmatprep.mubr.bf16.mxu0 0
        %1786 = vmatmul.mubr.bf16.gmra.mxu0 %v1655
        %v1787 = vpop.f32.mrf.mxu0
        %v1788 = vadd.f32 %v1609, %v1787
        %v1789 = vpop.f32.mrf.mxu0
        %v1790 = vpop.f32.mrf.mxu0
        %v1791 = vadd.f32 %v1612, %v1790
        %v1792 = vpop.f32.mrf.mxu0
        %1793 = vmatprep.mubr.bf16.mxu0 0
        %1794 = vmatmul.mubr.bf16.gmra.mxu0 %v1658
        %v1795 = vpop.f32.mrf.mxu0
        %v1796 = vadd.f32 %v1617, %v1795
        %v1797 = vpop.f32.mrf.mxu0
        %v1798 = vpop.f32.mrf.mxu0
        %v1799 = vadd.f32 %v1620, %v1798
        %v1800 = vpop.f32.mrf.mxu0
        %1801 = vmatprep.mubr.bf16.mxu0 0
        %1802 = vmatmul.mubr.bf16.gmra.mxu0 %v1661
        %v1803 = vpop.f32.mrf.mxu0
        %v1804 = vadd.f32 %v1625, %v1803
        %v1805 = vpop.f32.mrf.mxu0
        %v1806 = vpop.f32.mrf.mxu0
        %v1807 = vadd.f32 %v1628, %v1806
        %v1808 = vpop.f32.mrf.mxu0
        %1809 = vdwg.mxu0
        %v1810 = vlaneseq
        %v1811 = vshrl.u32 %v1810, 7
        %v1812 = vsub.s32 0, %v1811
        %v1813 = vrot.slane %v1422, %v1812
        %v1814 = vlaneseq
        %v1815 = vshrl.u32 %v1814, 7
        %v1816 = vsub.s32 0, %v1815
        %v1817 = vrot.slane %v1423, %v1816
        %v1818 = vlaneseq
        %v1819 = vshrl.u32 %v1818, 7
        %v1820 = vsub.s32 0, %v1819
        %v1821 = vrot.slane %v1424, %v1820
        %v1822 = vmul.f32 %v1813, %v1707
        %v1823 = vmul.f32 %v1817, %v1709
        %v1824 = vmul.f32 %v1821, %v1780
        %v1825 = vmul.f32 %v1813, %v1711
        %v1826 = vmul.f32 %v1817, %v1713
        %v1827 = vmul.f32 %v1821, %v1783
        %v1828 = vlaneseq
        %v1829 = vshrl.u32 %v1828, 7
        %v1830 = vsub.s32 1, %v1829
        %v1831 = vrot.slane %v1422, %v1830
        %v1832 = vlaneseq
        %v1833 = vshrl.u32 %v1832, 7
        %v1834 = vsub.s32 1, %v1833
        %v1835 = vrot.slane %v1423, %v1834
        %v1836 = vlaneseq
        %v1837 = vshrl.u32 %v1836, 7
        %v1838 = vsub.s32 1, %v1837
        %v1839 = vrot.slane %v1424, %v1838
        %v1840 = vmul.f32 %v1831, %v1717
        %v1841 = vmul.f32 %v1835, %v1719
        %v1842 = vmul.f32 %v1839, %v1788
        %v1843 = vmul.f32 %v1831, %v1721
        %v1844 = vmul.f32 %v1835, %v1723
        %v1845 = vmul.f32 %v1839, %v1791
        %v1846 = vadd.f32 %v1822, %v1840
        %v1847 = vadd.f32 %v1823, %v1841
        %v1848 = vadd.f32 %v1824, %v1842
        %v1849 = vadd.f32 %v1825, %v1843
        %v1850 = vadd.f32 %v1826, %v1844
        %v1851 = vadd.f32 %v1827, %v1845
        %v1852 = vlaneseq
        %v1853 = vshrl.u32 %v1852, 7
        %v1854 = vsub.s32 2, %v1853
        %v1855 = vrot.slane %v1422, %v1854
        %v1856 = vlaneseq
        %v1857 = vshrl.u32 %v1856, 7
        %v1858 = vsub.s32 2, %v1857
        %v1859 = vrot.slane %v1423, %v1858
        %v1860 = vlaneseq
        %v1861 = vshrl.u32 %v1860, 7
        %v1862 = vsub.s32 2, %v1861
        %v1863 = vrot.slane %v1424, %v1862
        %v1864 = vmul.f32 %v1855, %v1727
        %v1865 = vmul.f32 %v1859, %v1729
        %v1866 = vmul.f32 %v1863, %v1796
        %v1867 = vmul.f32 %v1855, %v1731
        %v1868 = vmul.f32 %v1859, %v1733
        %v1869 = vmul.f32 %v1863, %v1799
        %v1870 = vadd.f32 %v1846, %v1864
        %v1871 = vadd.f32 %v1847, %v1865
        %v1872 = vadd.f32 %v1848, %v1866
        %v1873 = vadd.f32 %v1849, %v1867
        %v1874 = vadd.f32 %v1850, %v1868
        %v1875 = vadd.f32 %v1851, %v1869
        %v1876 = vlaneseq
        %v1877 = vshrl.u32 %v1876, 7
        %v1878 = vsub.s32 3, %v1877
        %v1879 = vrot.slane %v1422, %v1878
        %v1880 = vlaneseq
        %v1881 = vshrl.u32 %v1880, 7
        %v1882 = vsub.s32 3, %v1881
        %v1883 = vrot.slane %v1423, %v1882
        %v1884 = vlaneseq
        %v1885 = vshrl.u32 %v1884, 7
        %v1886 = vsub.s32 3, %v1885
        %v1887 = vrot.slane %v1424, %v1886
        %v1888 = vmul.f32 %v1879, %v1737
        %v1889 = vmul.f32 %v1883, %v1739
        %v1890 = vmul.f32 %v1887, %v1804
        %v1891 = vmul.f32 %v1879, %v1741
        %v1892 = vmul.f32 %v1883, %v1743
        %v1893 = vmul.f32 %v1887, %v1807
        %v1894 = vadd.f32 %v1870, %v1888
        %v1895 = vadd.f32 %v1871, %v1889
        %v1896 = vadd.f32 %v1872, %v1890
        %v1897 = vadd.f32 %v1873, %v1891
        %v1898 = vadd.f32 %v1874, %v1892
        %v1899 = vadd.f32 %v1875, %v1893
        %v1900 = vld [vmem:[%s6] sm:$0xff]
        %v1901 = vld [vmem:[%s6 + $0x8] sm:$0xff]
        %1903 = vset.pattern.permute.xlu0 0
        %1904 = vperm.xlu0 %1903, %v1900
        %v1905 = vpop.permute.xlu0 %1904
        %1908 = vset.pattern.permute.xlu0 0
        %1909 = vperm.xlu0 %1908, %v1901
        %v1910 = vpop.permute.xlu0 %1909
        %v1912 = vadd.f32 %v1894, %v1905
        %v1913 = vadd.f32 %v1895, %v1905
        %v1914 = vadd.f32 %v1896, %v1905
        %v1915 = vadd.f32 %v1897, %v1910
        %v1916 = vadd.f32 %v1898, %v1910
        %v1917 = vadd.f32 %v1899, %v1910
        %v1918 = vmax.f32 %v1912, 0.0
        %v1919 = vmax.f32 %v1913, 0.0
        %v1920 = vmax.f32 %v1914, 0.0
        %v1921 = vmax.f32 %v1915, 0.0
        %v1922 = vmax.f32 %v1916, 0.0
        %v1923 = vmax.f32 %v1917, 0.0
        %v1924 = vpack.c.bf16 %v1921, %v1918
        %v1925 = vpack.c.bf16 %v1922, %v1919
        %v1926 = vpack.c.bf16 %v1923, %v1920
        %v1930 = vunpack.c.l.b16 %v1924
        %v1931 = vunpack.c.l.b16 %v1925
        %v1932 = vunpack.c.l.b16 %v1926
        %v1933 = vunpack.c.h.b16 %v1924
        %v1934 = vunpack.c.h.b16 %v1925
        %v1935 = vunpack.c.h.b16 %v1926
        %v1936 = vpack.c.b16 %v1931, %v1930
        %v1937 = vpack.c.b16 %v1932, %v1932
        %v1938 = vpack.c.b16 %v1934, %v1933
        %v1939 = vpack.c.b16 %v1935, %v1935
        %1944 = vst [vmem:[%s345] sm:$0xff] %v1936
        %1945 = vst [vmem:[%s345 + $0x8] sm:$0xf] %v1937
        %1946 = vst [vmem:[%s345 + $0xc] sm:$0xff] %v1938
        %1947 = vst [vmem:[%s345 + $0x14] sm:$0xf] %v1939
        %s1948 = sand.u32 %s211, 1
        %s1949 = scalar_lea.sflag [#allocation3], %s1948
        %s1950 = sand.u32 %s211, 1
        %s1951 = smul.addr %s1950, 24
        %s1952 = scalar_lea.vmem [#allocation2], %s1951
        // Predicated region
        $region49: #{tpu_custom_call.1} parent=47 // pred_check
          %p1953 = pneg %p221
        $region50: #{tpu_custom_call.1} parent=47 // pred_check_branch
          %1955 = sbr.rel (%p1953) target = $region52
        $region51: #{tpu_custom_call.1} parent=47 // pred_region
          %s1956 = smul.u32 3, %s26
          %s1958 = ssub.s32 384, 384
          %1959 = vsyncadd %s1949, %s1958
          %s1960 = smul.addr %s25, 6
          %s1961 = sadd.s32 %s1956, %s1960
          %s1962 = smul.addr %s1961, 64
          %s1963 = scalar_lea.hbm %s7, %s1962
          %s1964 = sshll.u32 %s1952, 4
          %s1965 = int_to_ptr.vmem [resolvable:$true] %s1964
          %1970 = dma.vmem_to_hbm [thread:$0]  %s1965, 384, %s1963, %s1949, 192, 192, 12
        $region52: #{tpu_custom_call.1} parent=47 // pred_fallthru
          _
      $region48: #{tpu_custom_call.1} parent=5 // pred_fallthru
        _
      %p1971 = scmp.le.s32.totalorder 2, %s16
      // Predicated region
      $region53: #{tpu_custom_call.1} parent=5 // pred_check
        %p1972 = pneg %p1971
      $region54: #{tpu_custom_call.1} parent=5 // pred_check_branch
        %1974 = sbr.rel (%p1972) target = $region56
      $region55: #{tpu_custom_call.1} parent=5 // pred_region
        %s1975 = ssub.s32 %s16, 2
        // Predicated region
        $region57: #{tpu_custom_call.1} parent=55 // pred_check
          %p1976 = pneg %p227
        $region58: #{tpu_custom_call.1} parent=55 // pred_check_branch
          %1978 = sbr.rel (%p1976) target = $region60
        $region59: #{tpu_custom_call.1} parent=55 // pred_region
          %s1979 = sand.u32 %s212, 1
          %s1980 = scalar_lea.sflag [#allocation3], %s1979
          %s1981 = sand.u32 %s212, 1
          %s1982 = smul.addr %s1981, 24
          %s1983 = scalar_lea.vmem [#allocation2], %s1982
          %1984 = dma.done %s1980, 384
        $region60: #{tpu_custom_call.1} parent=55 // pred_fallthru
          _
      $region56: #{tpu_custom_call.1} parent=5 // pred_fallthru
        _
    $region6: #{tpu_custom_call.1} parent=1 // loop_footer
      %s20 = sadd.s32 1, %s16
    $region7: #{tpu_custom_call.1} parent=1 // loop_footer_branch
      %15 = sbr.rel target = $region3
    $region8: #{tpu_custom_call.1} parent=1 // loop_exit
      _
    %1985 = vsyncpa [#allocation3], 1
    %s1986 = scalar_lea.sflag [#allocation3], 1
    %1987 = vsyncpa %s1986, 1

</llo_original>
